<compile_context>
chip_gen: v6e
topology: v6e:2x2x1
jax: 0.10.0
libtpu: 0.0.40
codegen_flags: <defaults>
</compile_context>

<pallas_src>
import functools

import jax
import jax.numpy as jnp
from jax.experimental import pallas as pl
from jax.experimental.pallas import tpu as pltpu

LN_EPS = 1e-5                       # torch.nn.LayerNorm default
_VMEM_LIMIT = 48 * 1024 * 1024      # explicit scoped-VMEM budget (fits v7x 64 MiB)


# ----------------------------------------------------------------------------
# Kernel 1: multi-head self-attention. grid = (B,), one batch element per step.
# ----------------------------------------------------------------------------
def _attn_kernel(x_ref, kpm_ref, amask_ref, wqkv_ref, bqkv_ref, wo_ref, bo_ref,
                 o_ref, ctx_sc, *, num_heads):
    cdt = wqkv_ref.dtype                  # matmul operand dtype (f32 or bf16)
    x = x_ref[0]                          # (S, E)
    S, E = x.shape
    H = num_heads
    Dh = E // H
    scaling = Dh ** -0.5

    # Fused QKV projection: one (S,E)@(E,3E) matmul, f32 accumulation.
    qkv = (jnp.dot(x.astype(cdt), wqkv_ref[...],
                   preferred_element_type=jnp.float32) + bqkv_ref[...])
    q = qkv[:, :E] * scaling              # fairseq scales q after the bias add
    k = qkv[:, E:2 * E]
    v = qkv[:, 2 * E:]

    # Additive attention bias built in-kernel (no (B,S,S) HBM tensor):
    # shared (S,S) attn-mask term + per-batch (1,S) key-padding row.
    bias = amask_ref[...] + kpm_ref[0]    # (S,S) + (1,S) -> (S,S)

    # Per-head attention; each head's context goes into its column slice of a
    # single (S,E) VMEM scratch so the out-projection is one full-width matmul.
    # TODO(synk): for long sequences, add a KV grid axis with an online-softmax
    # (flash) accumulator instead of holding full (S,S) scores per head.
    for h in range(H):
        sl = slice(h * Dh, (h + 1) * Dh)
        qh = q[:, sl].astype(cdt)
        kh = k[:, sl].astype(cdt)
        vh = v[:, sl].astype(cdt)
        s = jax.lax.dot_general(qh, kh, (((1,), (1,)), ((), ())),
                                preferred_element_type=jnp.float32) + bias
        m = jnp.max(s, axis=-1, keepdims=True)
        p = jnp.exp(s - m)
        l = jnp.sum(p, axis=-1, keepdims=True)
        # exact reciprocal keeps the tight correctness tolerance of the demo;
        # flip approx=True in production to move this onto the idle EUP slot.
        p = p * pl.reciprocal(l, approx=False)
        ctx_sc[:, sl] = jnp.dot(p.astype(cdt), vh,
                                preferred_element_type=jnp.float32)

    out = (jnp.dot(ctx_sc[...].astype(cdt), wo_ref[...],
                   preferred_element_type=jnp.float32) + bo_ref[...])
    o_ref[0] = out.astype(o_ref.dtype)


# ----------------------------------------------------------------------------
# Kernel 2: (x + attn) -> LayerNorm1 -> fc1 -> relu -> fc2 -> +residual -> LN2.
# Row-tiled over the flattened (B*S, E) slab; weights resident across steps.
# ----------------------------------------------------------------------------
def _ffn_ln_kernel(x_ref, attn_ref, g1_ref, be1_ref, w1_ref, b1_ref,
                   w2_ref, b2_ref, g2_ref, be2_ref, o_ref):
    cdt = w1_ref.dtype
    h = x_ref[...] + attn_ref[...]                              # residual add
    mu = jnp.mean(h, axis=-1, keepdims=True)
    var = jnp.mean((h - mu) ** 2, axis=-1, keepdims=True)
    h1 = (h - mu) * jax.lax.rsqrt(var + LN_EPS) * g1_ref[...] + be1_ref[...]

    z = (jnp.dot(h1.astype(cdt), w1_ref[...],
                 preferred_element_type=jnp.float32) + b1_ref[...])
    z = jnp.maximum(z, 0.0)                                     # relu
    ff = (jnp.dot(z.astype(cdt), w2_ref[...],
                  preferred_element_type=jnp.float32) + b2_ref[...])

    h2 = h1 + ff                                                # residual add
    mu2 = jnp.mean(h2, axis=-1, keepdims=True)
    var2 = jnp.mean((h2 - mu2) ** 2, axis=-1, keepdims=True)
    o_ref[...] = ((h2 - mu2) * jax.lax.rsqrt(var2 + LN_EPS)
                  * g2_ref[...] + be2_ref[...]).astype(o_ref.dtype)


# ----------------------------------------------------------------------------
# Wrapper
# ----------------------------------------------------------------------------
def transformer_encoder_layer(x_sbe, encoder_padding_mask, attn_mask, params,
                              *, tile_rows=512, compute_dtype=jnp.float32):
    """x_sbe: (S, B, E) float32.  encoder_padding_mask: (B, S) bool or None.
    attn_mask: (S, S) bool or None.  Returns (S, B, E) float32."""
    S, B, E = x_sbe.shape
    H = params["num_heads"]
    F = params["w1"].shape[0]

    # ---- weight prep: layout work stays in the wrapper, not the kernels ----
    wqkv = jnp.concatenate(
        [params["wq"].T, params["wk"].T, params["wv"].T], axis=1
    ).astype(compute_dtype)                                       # (E, 3E)
    bqkv = jnp.concatenate([params["bq"], params["bk"], params["bv"]], axis=1)
    wo_t = params["wo"].T.astype(compute_dtype)                   # (E, E)
    w1_t = params["w1"].T.astype(compute_dtype)                   # (E, F)
    w2_t = params["w2"].T.astype(compute_dtype)                   # (F, E)

    # ---- additive mask ingredients (combined inside the kernel) ----
    # NOTE: additive -1e8 / -1e9 instead of masked_fill(-inf): deliberate
    # deviation so a fully-padded key row yields a uniform softmax, not NaN.
    if attn_mask is not None:
        amask_add = jnp.where(attn_mask, jnp.float32(-1e8), jnp.float32(0.0))
    else:
        amask_add = jnp.zeros((S, S), jnp.float32)
    if encoder_padding_mask is not None:
        kpm_add = jnp.where(encoder_padding_mask, jnp.float32(-1e9),
                            jnp.float32(0.0)).reshape(B, 1, S)
    else:
        kpm_add = jnp.zeros((B, 1, S), jnp.float32)

    # single input-side transpose; the rest of the layer stays (B, S, E)
    x_bse = jnp.transpose(x_sbe, (1, 0, 2))

    full = lambda shape: pl.BlockSpec(shape, lambda b, _n=len(shape): (0,) * _n)
    attn_bse = pl.pallas_call(
        functools.partial(_attn_kernel, num_heads=H),
        out_shape=jax.ShapeDtypeStruct((B, S, E), jnp.float32),
        grid=(B,),
        in_specs=[
            pl.BlockSpec((1, S, E), lambda b: (b, 0, 0)),    # x (per batch)
            pl.BlockSpec((1, 1, S), lambda b: (b, 0, 0)),    # key-padding row
            full((S, S)),                                    # shared attn mask
            full((E, 3 * E)), full((1, 3 * E)),              # fused QKV W, b
            full((E, E)), full((1, E)),                      # out-proj W, b
        ],
        out_specs=pl.BlockSpec((1, S, E), lambda b: (b, 0, 0)),
        scratch_shapes=[pltpu.VMEM((S, E), jnp.float32)],    # per-head ctx slab
        compiler_params=pltpu.CompilerParams(
            dimension_semantics=("parallel",),
            vmem_limit_bytes=_VMEM_LIMIT),
    )(x_bse, kpm_add, amask_add, wqkv, bqkv, wo_t, params["bo"])

    # ---- kernel 2: stay in (B,S,E) order, flatten rows, tile over rows ----
    N = B * S
    xf = x_bse.reshape(N, E)
    af = attn_bse.reshape(N, E)

    tile_n = min(tile_rows, N)
    if N % tile_n != 0 or (tile_n % 8 != 0 and tile_n != N):
        tile_n = N                       # fall back to one full block

    row = lambda i: (i, 0)
    const = lambda shape: pl.BlockSpec(shape, lambda i: (0, 0))
    yf = pl.pallas_call(
        _ffn_ln_kernel,
        out_shape=jax.ShapeDtypeStruct((N, E), jnp.float32),
        grid=(N // tile_n,),
        in_specs=[
            pl.BlockSpec((tile_n, E), row),                  # x rows
            pl.BlockSpec((tile_n, E), row),                  # attn rows
            const((1, E)), const((1, E)),                    # ln1 gamma/beta
            const((E, F)), const((1, F)),                    # fc1 W^T, b
            const((F, E)), const((1, E)),                    # fc2 W^T, b
            const((1, E)), const((1, E)),                    # ln2 gamma/beta
        ],
        out_specs=pl.BlockSpec((tile_n, E), row),
        compiler_params=pltpu.CompilerParams(
            dimension_semantics=("parallel",),
            vmem_limit_bytes=_VMEM_LIMIT),
    )(xf, af,
      params["ln1_g"], params["ln1_b"],
      w1_t, params["b1"], w2_t, params["b2"],
      params["ln2_g"], params["ln2_b"])

    # single output-side transpose back to fairseq's (S, B, E)
    return jnp.transpose(yf.reshape(B, S, E), (1, 0, 2))


# ----------------------------------------------------------------------------
# Pure-JAX reference (mirrors the PyTorch forward, post-norm, no dropout)
# ----------------------------------------------------------------------------
def reference_layer(x_sbe, kpm, attn_mask, p):
    S, B, E = x_sbe.shape
    H = p["num_heads"]
    Dh = E // H
    x2 = x_sbe.reshape(S * B, E)
    q = (x2 @ p["wq"].T + p["bq"]) * (Dh ** -0.5)
    k = x2 @ p["wk"].T + p["bk"]
    v = x2 @ p["wv"].T + p["bv"]
    q = q.reshape(S, B, H, Dh).transpose(1, 2, 0, 3)
    k = k.reshape(S, B, H, Dh).transpose(1, 2, 0, 3)
    v = v.reshape(S, B, H, Dh).transpose(1, 2, 0, 3)
    s = jnp.einsum("bhqd,bhkd->bhqk", q, k)
    if attn_mask is not None:
        s = s + jnp.where(attn_mask, -1e8, 0.0)[None, None]
    if kpm is not None:
        s = s + jnp.where(kpm, -1e9, 0.0)[:, None, None, :]
    pr = jax.nn.softmax(s, axis=-1)
    ctx = jnp.einsum("bhqk,bhkd->bhqd", pr, v)
    ctx = ctx.transpose(2, 0, 1, 3).reshape(S * B, E)
    attn = ctx @ p["wo"].T + p["bo"]

    def ln(z, g, b):
        mu = z.mean(-1, keepdims=True)
        var = ((z - mu) ** 2).mean(-1, keepdims=True)
        return (z - mu) / jnp.sqrt(var + LN_EPS) * g + b

    h1 = ln(x2 + attn, p["ln1_g"], p["ln1_b"])
    z = jnp.maximum(h1 @ p["w1"].T + p["b1"], 0.0)
    ff = z @ p["w2"].T + p["b2"]
    y = ln(h1 + ff, p["ln2_g"], p["ln2_b"])
    return y.reshape(S, B, E)


# ----------------------------------------------------------------------------
# Deterministic parameter init + driver
# ----------------------------------------------------------------------------
def make_params(key, embed_dim, ffn_dim, num_heads):
    ks = jax.random.split(key, 12)
    n = lambda k, shape, scale=0.02: scale * jax.random.normal(k, shape, jnp.float32)
    return {
        "num_heads": num_heads,
        "wq": n(ks[0], (embed_dim, embed_dim)), "bq": n(ks[1], (1, embed_dim), 0.01),
        "wk": n(ks[2], (embed_dim, embed_dim)), "bk": n(ks[3], (1, embed_dim), 0.01),
        "wv": n(ks[4], (embed_dim, embed_dim)), "bv": n(ks[5], (1, embed_dim), 0.01),
        "wo": n(ks[6], (embed_dim, embed_dim)), "bo": n(ks[7], (1, embed_dim), 0.01),
        "w1": n(ks[8], (ffn_dim, embed_dim)),   "b1": n(ks[9], (1, ffn_dim), 0.01),
        "w2": n(ks[10], (embed_dim, ffn_dim)),  "b2": n(ks[11], (1, embed_dim), 0.01),
        "ln1_g": jnp.ones((1, embed_dim), jnp.float32),
        "ln1_b": jnp.zeros((1, embed_dim), jnp.float32),
        "ln2_g": jnp.ones((1, embed_dim), jnp.float32),
        "ln2_b": jnp.zeros((1, embed_dim), jnp.float32),
    }


if __name__ == "__main__":
    S, B, E, H, F = 8, 2, 32, 4, 64
    key = jax.random.PRNGKey(0)
    kx, kp = jax.random.split(key)

    x = jax.random.normal(kx, (S, B, E), jnp.float32)       # (seq, batch, embed)
    # key_padding_mask: batch 1 has the last 2 positions padded
    kpm = jnp.zeros((B, S), bool).at[1, -2:].set(True)
    # attn_mask: exclude positions further than 4 apart (banded attention)
    idx = jnp.arange(S)
    attn_mask = jnp.abs(idx[:, None] - idx[None, :]) > 4

    params = make_params(kp, E, F, H)

    # TODO(synk): dropout modules, quant_noise and pydec Composition tracking are
    # train-time / analysis features with no kernel-side equivalent; forward is
    # implemented in eval mode with composition=None.
    # tile_rows=8 so the demo's row grid has 2 parallel steps (production
    # default is 512-row tiles); compute_dtype=bf16 is available for v6e/v7x.
    y = transformer_encoder_layer(x, kpm, attn_mask, params, tile_rows=8,
                                  compute_dtype=jnp.float32)
    y = jax.block_until_ready(y)

    y_ref = reference_layer(x, kpm, attn_mask, params)
    assert jnp.allclose(y, y_ref, atol=1e-4, rtol=1e-4), (
        float(jnp.max(jnp.abs(y - y_ref))))

    print("KERNEL_OK")
</pallas_src>

<mosaic_0001>
module attributes {stable_mosaic.version = 11 : i64} {
  func.func @_attn_kernel(%arg0: i32, %arg1: memref<1x8x32xf32, #tpu.memory_space<vmem>>, %arg2: memref<1x1x8xf32, #tpu.memory_space<vmem>>, %arg3: memref<8x8xf32, #tpu.memory_space<vmem>>, %arg4: memref<32x96xf32, #tpu.memory_space<vmem>>, %arg5: memref<1x96xf32, #tpu.memory_space<vmem>>, %arg6: memref<32x32xf32, #tpu.memory_space<vmem>>, %arg7: memref<1x32xf32, #tpu.memory_space<vmem>>, %arg8: memref<1x8x32xf32, #tpu.memory_space<vmem>>, %arg9: memref<8x32xf32, #tpu.memory_space<vmem>>) attributes {dimension_semantics = [#tpu.dimension_semantics<parallel>], iteration_bounds = array<i64: 2>, scalar_prefetch = 0 : i64, scratch_operands = 1 : i64, tpu.core_type = #tpu.core_type<tc>, window_params = [{transform_indices = @transform_0, window_bounds = array<i64: 1, 8, 32>}, {transform_indices = @transform_1, window_bounds = array<i64: 1, 1, 8>}, {pipeline_mode = #tpu.pipeline_mode<synchronous>, transform_indices = @transform_2, window_bounds = array<i64: 8, 8>}, {pipeline_mode = #tpu.pipeline_mode<synchronous>, transform_indices = @transform_3, window_bounds = array<i64: 32, 96>}, {pipeline_mode = #tpu.pipeline_mode<synchronous>, transform_indices = @transform_4, window_bounds = array<i64: 1, 96>}, {pipeline_mode = #tpu.pipeline_mode<synchronous>, transform_indices = @transform_5, window_bounds = array<i64: 32, 32>}, {pipeline_mode = #tpu.pipeline_mode<synchronous>, transform_indices = @transform_6, window_bounds = array<i64: 1, 32>}, {transform_indices = @transform_7, window_bounds = array<i64: 1, 8, 32>}]} {
    %c0 = arith.constant 0 : index
    %c0_0 = arith.constant 0 : index
    %c0_1 = arith.constant 0 : index
    %0 = vector.load %arg1[%c0, %c0_0, %c0_1] : memref<1x8x32xf32, #tpu.memory_space<vmem>>, vector<1x8x32xf32>
    %1 = vector.shape_cast %0 : vector<1x8x32xf32> to vector<8x32xf32>
    %c0_2 = arith.constant 0 : index
    %c0_3 = arith.constant 0 : index
    %2 = vector.load %arg4[%c0_2, %c0_3] : memref<32x96xf32, #tpu.memory_space<vmem>>, vector<32x96xf32>
    %cst = arith.constant dense<0.000000e+00> : vector<8x96xf32>
    %3 = tpu.matmul %1, %2, %cst {dimension_numbers = #tpu.dot_dimension_numbers<[1], [0], [0], [1], [0, 0, 1, 1], [], []>} : vector<8x32xf32>, vector<32x96xf32>, vector<8x96xf32> -> vector<8x96xf32>
    %c0_4 = arith.constant 0 : index
    %c0_5 = arith.constant 0 : index
    %4 = vector.load %arg5[%c0_4, %c0_5] : memref<1x96xf32, #tpu.memory_space<vmem>>, vector<1x96xf32>
    %5 = vector.broadcast %4 : vector<1x96xf32> to vector<8x96xf32>
    %6 = arith.addf %3, %5 : vector<8x96xf32>
    %7 = vector.extract_strided_slice %6 {offsets = [0, 0], sizes = [8, 32], strides = [1, 1]} : vector<8x96xf32> to vector<8x32xf32>
    %cst_6 = arith.constant 0.353553385 : f32
    %8 = vector.broadcast %cst_6 : f32 to vector<8x32xf32>
    %9 = arith.mulf %7, %8 : vector<8x32xf32>
    %10 = vector.extract_strided_slice %6 {offsets = [0, 32], sizes = [8, 32], strides = [1, 1]} : vector<8x96xf32> to vector<8x32xf32>
    %11 = vector.extract_strided_slice %6 {offsets = [0, 64], sizes = [8, 32], strides = [1, 1]} : vector<8x96xf32> to vector<8x32xf32>
    %c0_7 = arith.constant 0 : index
    %c0_8 = arith.constant 0 : index
    %12 = vector.load %arg3[%c0_7, %c0_8] : memref<8x8xf32, #tpu.memory_space<vmem>>, vector<8x8xf32>
    %c0_9 = arith.constant 0 : index
    %c0_10 = arith.constant 0 : index
    %c0_11 = arith.constant 0 : index
    %13 = vector.load %arg2[%c0_9, %c0_10, %c0_11] : memref<1x1x8xf32, #tpu.memory_space<vmem>>, vector<1x1x8xf32>
    %14 = vector.shape_cast %13 : vector<1x1x8xf32> to vector<1x8xf32>
    %15 = vector.broadcast %14 : vector<1x8xf32> to vector<8x8xf32>
    %16 = arith.addf %12, %15 : vector<8x8xf32>
    %17 = vector.extract_strided_slice %9 {offsets = [0, 0], sizes = [8, 8], strides = [1, 1]} : vector<8x32xf32> to vector<8x8xf32>
    %18 = vector.extract_strided_slice %10 {offsets = [0, 0], sizes = [8, 8], strides = [1, 1]} : vector<8x32xf32> to vector<8x8xf32>
    %19 = vector.extract_strided_slice %11 {offsets = [0, 0], sizes = [8, 8], strides = [1, 1]} : vector<8x32xf32> to vector<8x8xf32>
    %cst_12 = arith.constant dense<0.000000e+00> : vector<8x8xf32>
    %20 = tpu.matmul %17, %18, %cst_12 {dimension_numbers = #tpu.dot_dimension_numbers<[1], [1], [0], [0], [0, 0, 1, 0], [], []>} : vector<8x8xf32>, vector<8x8xf32>, vector<8x8xf32> -> vector<8x8xf32>
    %21 = arith.addf %20, %16 : vector<8x8xf32>
    %cst_13 = arith.constant dense<0xFF800000> : vector<8xf32>
    %22 = vector.multi_reduction <maximumf>, %21, %cst_13 [1] : vector<8x8xf32> to vector<8xf32>
    %23 = vector.shape_cast %22 : vector<8xf32> to vector<8x1xf32>
    %24 = vector.broadcast %23 : vector<8x1xf32> to vector<8x8xf32>
    %25 = arith.subf %21, %24 : vector<8x8xf32>
    %26 = math.exp %25 : vector<8x8xf32>
    %cst_14 = arith.constant dense<0.000000e+00> : vector<8xf32>
    %27 = vector.multi_reduction <add>, %26, %cst_14 [1] : vector<8x8xf32> to vector<8xf32>
    %28 = vector.shape_cast %27 : vector<8xf32> to vector<8x1xf32>
    %29 = tpu.reciprocal %28 : vector<8x1xf32> -> vector<8x1xf32>
    %30 = vector.broadcast %29 : vector<8x1xf32> to vector<8x8xf32>
    %31 = arith.mulf %26, %30 : vector<8x8xf32>
    %cst_15 = arith.constant dense<0.000000e+00> : vector<8x8xf32>
    %32 = tpu.matmul %31, %19, %cst_15 {dimension_numbers = #tpu.dot_dimension_numbers<[1], [0], [0], [1], [0, 0, 1, 1], [], []>} : vector<8x8xf32>, vector<8x8xf32>, vector<8x8xf32> -> vector<8x8xf32>
    %c0_16 = arith.constant 0 : index
    %c0_17 = arith.constant 0 : index
    %33 = vector.load %arg9[%c0_16, %c0_17] : memref<8x32xf32, #tpu.memory_space<vmem>>, vector<8x8xf32>
    tpu.vector_store %arg9[%c0_16, %c0_17], %32 {strides = array<i32>} : memref<8x32xf32, #tpu.memory_space<vmem>>, vector<8x8xf32>,
    %34 = vector.extract_strided_slice %9 {offsets = [0, 8], sizes = [8, 8], strides = [1, 1]} : vector<8x32xf32> to vector<8x8xf32>
    %35 = vector.extract_strided_slice %10 {offsets = [0, 8], sizes = [8, 8], strides = [1, 1]} : vector<8x32xf32> to vector<8x8xf32>
    %36 = vector.extract_strided_slice %11 {offsets = [0, 8], sizes = [8, 8], strides = [1, 1]} : vector<8x32xf32> to vector<8x8xf32>
    %cst_18 = arith.constant dense<0.000000e+00> : vector<8x8xf32>
    %37 = tpu.matmul %34, %35, %cst_18 {dimension_numbers = #tpu.dot_dimension_numbers<[1], [1], [0], [0], [0, 0, 1, 0], [], []>} : vector<8x8xf32>, vector<8x8xf32>, vector<8x8xf32> -> vector<8x8xf32>
    %38 = arith.addf %37, %16 : vector<8x8xf32>
    %cst_19 = arith.constant dense<0xFF800000> : vector<8xf32>
    %39 = vector.multi_reduction <maximumf>, %38, %cst_19 [1] : vector<8x8xf32> to vector<8xf32>
    %40 = vector.shape_cast %39 : vector<8xf32> to vector<8x1xf32>
    %41 = vector.broadcast %40 : vector<8x1xf32> to vector<8x8xf32>
    %42 = arith.subf %38, %41 : vector<8x8xf32>
    %43 = math.exp %42 : vector<8x8xf32>
    %cst_20 = arith.constant dense<0.000000e+00> : vector<8xf32>
    %44 = vector.multi_reduction <add>, %43, %cst_20 [1] : vector<8x8xf32> to vector<8xf32>
    %45 = vector.shape_cast %44 : vector<8xf32> to vector<8x1xf32>
    %46 = tpu.reciprocal %45 : vector<8x1xf32> -> vector<8x1xf32>
    %47 = vector.broadcast %46 : vector<8x1xf32> to vector<8x8xf32>
    %48 = arith.mulf %43, %47 : vector<8x8xf32>
    %cst_21 = arith.constant dense<0.000000e+00> : vector<8x8xf32>
    %49 = tpu.matmul %48, %36, %cst_21 {dimension_numbers = #tpu.dot_dimension_numbers<[1], [0], [0], [1], [0, 0, 1, 1], [], []>} : vector<8x8xf32>, vector<8x8xf32>, vector<8x8xf32> -> vector<8x8xf32>
    %c0_22 = arith.constant 0 : index
    %c8 = arith.constant 8 : index
    %50 = vector.load %arg9[%c0_22, %c8] : memref<8x32xf32, #tpu.memory_space<vmem>>, vector<8x8xf32>
    tpu.vector_store %arg9[%c0_22, %c8], %49 {strides = array<i32>} : memref<8x32xf32, #tpu.memory_space<vmem>>, vector<8x8xf32>,
    %51 = vector.extract_strided_slice %9 {offsets = [0, 16], sizes = [8, 8], strides = [1, 1]} : vector<8x32xf32> to vector<8x8xf32>
    %52 = vector.extract_strided_slice %10 {offsets = [0, 16], sizes = [8, 8], strides = [1, 1]} : vector<8x32xf32> to vector<8x8xf32>
    %53 = vector.extract_strided_slice %11 {offsets = [0, 16], sizes = [8, 8], strides = [1, 1]} : vector<8x32xf32> to vector<8x8xf32>
    %cst_23 = arith.constant dense<0.000000e+00> : vector<8x8xf32>
    %54 = tpu.matmul %51, %52, %cst_23 {dimension_numbers = #tpu.dot_dimension_numbers<[1], [1], [0], [0], [0, 0, 1, 0], [], []>} : vector<8x8xf32>, vector<8x8xf32>, vector<8x8xf32> -> vector<8x8xf32>
    %55 = arith.addf %54, %16 : vector<8x8xf32>
    %cst_24 = arith.constant dense<0xFF800000> : vector<8xf32>
    %56 = vector.multi_reduction <maximumf>, %55, %cst_24 [1] : vector<8x8xf32> to vector<8xf32>
    %57 = vector.shape_cast %56 : vector<8xf32> to vector<8x1xf32>
    %58 = vector.broadcast %57 : vector<8x1xf32> to vector<8x8xf32>
    %59 = arith.subf %55, %58 : vector<8x8xf32>
    %60 = math.exp %59 : vector<8x8xf32>
    %cst_25 = arith.constant dense<0.000000e+00> : vector<8xf32>
    %61 = vector.multi_reduction <add>, %60, %cst_25 [1] : vector<8x8xf32> to vector<8xf32>
    %62 = vector.shape_cast %61 : vector<8xf32> to vector<8x1xf32>
    %63 = tpu.reciprocal %62 : vector<8x1xf32> -> vector<8x1xf32>
    %64 = vector.broadcast %63 : vector<8x1xf32> to vector<8x8xf32>
    %65 = arith.mulf %60, %64 : vector<8x8xf32>
    %cst_26 = arith.constant dense<0.000000e+00> : vector<8x8xf32>
    %66 = tpu.matmul %65, %53, %cst_26 {dimension_numbers = #tpu.dot_dimension_numbers<[1], [0], [0], [1], [0, 0, 1, 1], [], []>} : vector<8x8xf32>, vector<8x8xf32>, vector<8x8xf32> -> vector<8x8xf32>
    %c0_27 = arith.constant 0 : index
    %c16 = arith.constant 16 : index
    %67 = vector.load %arg9[%c0_27, %c16] : memref<8x32xf32, #tpu.memory_space<vmem>>, vector<8x8xf32>
    tpu.vector_store %arg9[%c0_27, %c16], %66 {strides = array<i32>} : memref<8x32xf32, #tpu.memory_space<vmem>>, vector<8x8xf32>,
    %68 = vector.extract_strided_slice %9 {offsets = [0, 24], sizes = [8, 8], strides = [1, 1]} : vector<8x32xf32> to vector<8x8xf32>
    %69 = vector.extract_strided_slice %10 {offsets = [0, 24], sizes = [8, 8], strides = [1, 1]} : vector<8x32xf32> to vector<8x8xf32>
    %70 = vector.extract_strided_slice %11 {offsets = [0, 24], sizes = [8, 8], strides = [1, 1]} : vector<8x32xf32> to vector<8x8xf32>
    %cst_28 = arith.constant dense<0.000000e+00> : vector<8x8xf32>
    %71 = tpu.matmul %68, %69, %cst_28 {dimension_numbers = #tpu.dot_dimension_numbers<[1], [1], [0], [0], [0, 0, 1, 0], [], []>} : vector<8x8xf32>, vector<8x8xf32>, vector<8x8xf32> -> vector<8x8xf32>
    %72 = arith.addf %71, %16 : vector<8x8xf32>
    %cst_29 = arith.constant dense<0xFF800000> : vector<8xf32>
    %73 = vector.multi_reduction <maximumf>, %72, %cst_29 [1] : vector<8x8xf32> to vector<8xf32>
    %74 = vector.shape_cast %73 : vector<8xf32> to vector<8x1xf32>
    %75 = vector.broadcast %74 : vector<8x1xf32> to vector<8x8xf32>
    %76 = arith.subf %72, %75 : vector<8x8xf32>
    %77 = math.exp %76 : vector<8x8xf32>
    %cst_30 = arith.constant dense<0.000000e+00> : vector<8xf32>
    %78 = vector.multi_reduction <add>, %77, %cst_30 [1] : vector<8x8xf32> to vector<8xf32>
    %79 = vector.shape_cast %78 : vector<8xf32> to vector<8x1xf32>
    %80 = tpu.reciprocal %79 : vector<8x1xf32> -> vector<8x1xf32>
    %81 = vector.broadcast %80 : vector<8x1xf32> to vector<8x8xf32>
    %82 = arith.mulf %77, %81 : vector<8x8xf32>
    %cst_31 = arith.constant dense<0.000000e+00> : vector<8x8xf32>
    %83 = tpu.matmul %82, %70, %cst_31 {dimension_numbers = #tpu.dot_dimension_numbers<[1], [0], [0], [1], [0, 0, 1, 1], [], []>} : vector<8x8xf32>, vector<8x8xf32>, vector<8x8xf32> -> vector<8x8xf32>
    %c0_32 = arith.constant 0 : index
    %c24 = arith.constant 24 : index
    %84 = vector.load %arg9[%c0_32, %c24] : memref<8x32xf32, #tpu.memory_space<vmem>>, vector<8x8xf32>
    tpu.vector_store %arg9[%c0_32, %c24], %83 {strides = array<i32>} : memref<8x32xf32, #tpu.memory_space<vmem>>, vector<8x8xf32>,
    %c0_33 = arith.constant 0 : index
    %c0_34 = arith.constant 0 : index
    %85 = vector.load %arg9[%c0_33, %c0_34] : memref<8x32xf32, #tpu.memory_space<vmem>>, vector<8x32xf32>
    %c0_35 = arith.constant 0 : index
    %c0_36 = arith.constant 0 : index
    %86 = vector.load %arg6[%c0_35, %c0_36] : memref<32x32xf32, #tpu.memory_space<vmem>>, vector<32x32xf32>
    %cst_37 = arith.constant dense<0.000000e+00> : vector<8x32xf32>
    %87 = tpu.matmul %85, %86, %cst_37 {dimension_numbers = #tpu.dot_dimension_numbers<[1], [0], [0], [1], [0, 0, 1, 1], [], []>} : vector<8x32xf32>, vector<32x32xf32>, vector<8x32xf32> -> vector<8x32xf32>
    %c0_38 = arith.constant 0 : index
    %c0_39 = arith.constant 0 : index
    %88 = vector.load %arg7[%c0_38, %c0_39] : memref<1x32xf32, #tpu.memory_space<vmem>>, vector<1x32xf32>
    %89 = vector.broadcast %88 : vector<1x32xf32> to vector<8x32xf32>
    %90 = arith.addf %87, %89 : vector<8x32xf32>
    %c0_40 = arith.constant 0 : index
    %c0_41 = arith.constant 0 : index
    %c0_42 = arith.constant 0 : index
    %91 = vector.load %arg8[%c0_40, %c0_41, %c0_42] : memref<1x8x32xf32, #tpu.memory_space<vmem>>, vector<1x8x32xf32>
    %92 = vector.shape_cast %91 : vector<1x8x32xf32> to vector<8x32xf32>
    %93 = vector.shape_cast %90 : vector<8x32xf32> to vector<1x8x32xf32>
    tpu.vector_store %arg8[%c0_40, %c0_41, %c0_42], %93 {strides = array<i32>} : memref<1x8x32xf32, #tpu.memory_space<vmem>>, vector<1x8x32xf32>,
    return
  }
  func.func @transform_0(%arg0: i32) -> (i32, i32, i32) {
    %c0_i32 = arith.constant 0 : i32
    %c0_i32_0 = arith.constant 0 : i32
    %c0_i32_1 = arith.constant 0 : i32
    return %arg0, %c0_i32, %c0_i32_0 : i32, i32, i32
  }
  func.func @transform_1(%arg0: i32) -> (i32, i32, i32) {
    %c0_i32 = arith.constant 0 : i32
    %c0_i32_0 = arith.constant 0 : i32
    %c0_i32_1 = arith.constant 0 : i32
    return %arg0, %c0_i32, %c0_i32_0 : i32, i32, i32
  }
  func.func @transform_2(%arg0: i32) -> (i32, i32) {
    %c0_i32 = arith.constant 0 : i32
    %c0_i32_0 = arith.constant 0 : i32
    %c0_i32_1 = arith.constant 0 : i32
    return %c0_i32, %c0_i32_0 : i32, i32
  }
  func.func @transform_3(%arg0: i32) -> (i32, i32) {
    %c0_i32 = arith.constant 0 : i32
    %c0_i32_0 = arith.constant 0 : i32
    %c0_i32_1 = arith.constant 0 : i32
    return %c0_i32, %c0_i32_0 : i32, i32
  }
  func.func @transform_4(%arg0: i32) -> (i32, i32) {
    %c0_i32 = arith.constant 0 : i32
    %c0_i32_0 = arith.constant 0 : i32
    %c0_i32_1 = arith.constant 0 : i32
    return %c0_i32, %c0_i32_0 : i32, i32
  }
  func.func @transform_5(%arg0: i32) -> (i32, i32) {
    %c0_i32 = arith.constant 0 : i32
    %c0_i32_0 = arith.constant 0 : i32
    %c0_i32_1 = arith.constant 0 : i32
    return %c0_i32, %c0_i32_0 : i32, i32
  }
  func.func @transform_6(%arg0: i32) -> (i32, i32) {
    %c0_i32 = arith.constant 0 : i32
    %c0_i32_0 = arith.constant 0 : i32
    %c0_i32_1 = arith.constant 0 : i32
    return %c0_i32, %c0_i32_0 : i32, i32
  }
  func.func @transform_7(%arg0: i32) -> (i32, i32, i32) {
    %c0_i32 = arith.constant 0 : i32
    %c0_i32_0 = arith.constant 0 : i32
    %c0_i32_1 = arith.constant 0 : i32
    return %arg0, %c0_i32, %c0_i32_0 : i32, i32, i32
  }
}

</mosaic_0001>

<llo_original>
// kernel: tpu_custom_call.1
$region0: #{tpu_custom_call.1}
  #allocation0 [shape = 'u32[]', space=smem, size = 0x4, offset = 0x4, fixed_abs, tag = 'smem constant byte address 0x4 - core index']
  #allocation1 [shape = 'u32[144,128]{1,0:T(1,128)}', space=vmem, size = 0x12000, scoped, tag = 'internal scratch']
  #allocation2 [shape = 'f32[8,32]{1,0:T(8,128)}', space=vmem, size = 0x1000, scoped, tag = 'scratch operand']
  %s0 = inlined_call_operand.hbm [shape: f32[2,8,32], index: 0, kind: input, shape index: {}]
  %s1 = inlined_call_operand.hbm [shape: f32[2,1,8], index: 1, kind: input, shape index: {}]
  %s2 = inlined_call_operand.hbm [shape: f32[8,8], index: 2, kind: input, shape index: {}]
  %s3 = inlined_call_operand.hbm [shape: f32[32,96], index: 3, kind: input, shape index: {}]
  %s4 = inlined_call_operand.vmem [shape: f32[1,96], index: 4, kind: input, shape index: {}]
  %s5 = inlined_call_operand.hbm [shape: f32[32,32], index: 5, kind: input, shape index: {}]
  %s6 = inlined_call_operand.vmem [shape: f32[1,32], index: 6, kind: input, shape index: {}]
  %s7 = inlined_call_operand.hbm [shape: f32[2,8,32], index: 7, kind: output, shape index: {}]
  %s8 = sld [smem:[#allocation0]]
  $region81: #{tpu_custom_call.1} parent=0
    _
  %s10 = ssub.s32 1, %s8
  %s11 = scalar_select 0, %s10, %s8
  $region1: #{tpu_custom_call.1} parent=0
    #allocation3 [shape = 'u8[8192]{0}', space=vmem, size = 0x2000, scoped, tag = 'input window, operand 0']
    #allocation4 [shape = 's32[2]{0}', space=sflag, size = 0x8, scoped, tag = 'scoped memory for tpu_custom_call.1']
    #allocation5 [shape = 's32[2]{0}', space=sflag, size = 0x8, scoped, tag = 'scoped memory for tpu_custom_call.1']
    #allocation6 [shape = 'u8[1024]{0}', space=vmem, size = 0x400, scoped, tag = 'input window, operand 1']
    #allocation7 [shape = 's32[2]{0}', space=sflag, size = 0x8, scoped, tag = 'scoped memory for tpu_custom_call.1']
    #allocation8 [shape = 'u8[4096]{0}', space=vmem, size = 0x1000, scoped, tag = 'input window, operand 2, single buffered']
    #allocation9 [shape = 'u8[16384]{0}', space=vmem, size = 0x4000, scoped, tag = 'input window, operand 3, single buffered']
    #allocation10 [shape = 's32[1]{0}', space=sflag, size = 0x4, scoped, tag = 'scoped memory for tpu_custom_call.1']
    #allocation11 [shape = 'u8[16384]{0}', space=vmem, size = 0x4000, scoped, tag = 'input window, operand 5, single buffered']
    #allocation12 [shape = 'u8[8192]{0}', space=vmem, size = 0x2000, scoped, tag = 'output window, operand 0']
    %12 = vsyncpa [#allocation4], 0
    %s13 = scalar_lea.sflag [#allocation4], 1
    %14 = vsyncpa %s13, 0
    %15 = vsyncpa [#allocation7], 0
    %s16 = scalar_lea.sflag [#allocation7], 1
    %17 = vsyncpa %s16, 0
    %18 = vsyncpa [#allocation10], 0
    %19 = vsyncpa [#allocation5], 0
    %s20 = scalar_lea.sflag [#allocation5], 1
    %21 = vsyncpa %s20, 0
    loop: start=0, step=1, limit=4
    $region2: #{tpu_custom_call.1} parent=1 // loop_pre_header
      _
    $region3: #{tpu_custom_call.1} parent=1 // loop_header
      %s23 = sphi 0, %s27
      %p24 = scmp.ge.s32.totalorder %s23, 4
      %s33 = sphi 0, %s35
      %s36 = sphi 0, %s33
      %s37 = sphi 0, %s36
      %s53 = sphi 0, %s37
      %s59 = sphi 0, %s61
      %s62 = sphi 0, %s59
      %s63 = sphi 0, %s62
      %s79 = sphi 0, %s63
      %s83 = sphi 0, %s83
      %s85 = sphi 0, %s83
      %s86 = sphi 0, %s85
      %s100 = sphi 0, %s86
      %s104 = sphi 0, %s104
      %s106 = sphi 0, %s104
      %s107 = sphi 0, %s106
      %s121 = sphi 0, %s107
      %s125 = sphi 0, %s125
      %s127 = sphi 0, %s125
      %s128 = sphi 0, %s127
      %s142 = sphi 0, %s128
      %s146 = sphi 0, %s146
      %s148 = sphi 0, %s146
      %s149 = sphi 0, %s148
      %s163 = sphi 0, %s149
      %s167 = sphi 0, %s167
      %s169 = sphi 0, %s167
      %s170 = sphi 0, %s169
      %s184 = sphi 0, %s170
      %s190 = sphi 0, %s192
      %s193 = sphi 0, %s190
      %s194 = sphi 0, %s193
      %s210 = sphi 0, %s194
    $region4: #{tpu_custom_call.1} parent=1 // loop_header_branch
      %26 = sbr.rel (%p24) target = $region8
    $region5: #{tpu_custom_call.1} parent=1 // loop_body
      %s28 = ssub.s32 %s23, 1
      %s29 = ssub.s32 %s23, 2
      %s30 = sadd.s32 %s23, 1
      %s31 = ssub.s32 %s23, %s30
      %p32 = scmp.eq.s32.totalorder %s31, 0
      %s34 = sadd.s32 %s33, 1
      %s35 = scalar_select %p32, %s33, %s34
      %p38 = pneg %p32
      %p39 = scmp.eq.s32.totalorder %s23, 1
      %p40 = por %p38, %p39
      %p41 = scmp.ne.s32.totalorder %s33, %s36
      %p42 = scmp.eq.s32.totalorder %s23, 0
      %p43 = por %p41, %p42
      %p44 = scmp.ne.s32.totalorder %s33, %s36
      %p45 = scmp.eq.s32.totalorder %s28, 1
      %p46 = por %p44, %p45
      %p47 = scmp.ne.s32.totalorder %s36, %s37
      %p48 = scmp.eq.s32.totalorder %s28, 0
      %p49 = por %p47, %p48
      %p50 = scmp.ne.s32.totalorder %s36, %s37
      %p51 = scmp.eq.s32.totalorder %s29, 1
      %p52 = por %p50, %p51
      %p54 = scmp.ne.s32.totalorder %s37, %s53
      %p55 = scmp.eq.s32.totalorder %s29, 0
      %p56 = por %p54, %p55
      %s57 = ssub.s32 %s23, %s30
      %p58 = scmp.eq.s32.totalorder %s57, 0
      %s60 = sadd.s32 %s59, 1
      %s61 = scalar_select %p58, %s59, %s60
      %p64 = pneg %p58
      %p65 = scmp.eq.s32.totalorder %s23, 1
      %p66 = por %p64, %p65
      %p67 = scmp.ne.s32.totalorder %s59, %s62
      %p68 = scmp.eq.s32.totalorder %s23, 0
      %p69 = por %p67, %p68
      %p70 = scmp.ne.s32.totalorder %s59, %s62
      %p71 = scmp.eq.s32.totalorder %s28, 1
      %p72 = por %p70, %p71
      %p73 = scmp.ne.s32.totalorder %s62, %s63
      %p74 = scmp.eq.s32.totalorder %s28, 0
      %p75 = por %p73, %p74
      %p76 = scmp.ne.s32.totalorder %s62, %s63
      %p77 = scmp.eq.s32.totalorder %s29, 1
      %p78 = por %p76, %p77
      %p80 = scmp.ne.s32.totalorder %s63, %s79
      %p81 = scmp.eq.s32.totalorder %s29, 0
      %p82 = por %p80, %p81
      %s84 = sadd.s32 %s83, 1
      %p87 = scmp.eq.s32.totalorder %s23, 1
      %p88 = scmp.ne.s32.totalorder %s83, %s85
      %p89 = scmp.eq.s32.totalorder %s23, 0
      %p90 = por %p88, %p89
      %p91 = scmp.ne.s32.totalorder %s83, %s85
      %p92 = scmp.eq.s32.totalorder %s28, 1
      %p93 = por %p91, %p92
      %p94 = scmp.ne.s32.totalorder %s85, %s86
      %p95 = scmp.eq.s32.totalorder %s28, 0
      %p96 = por %p94, %p95
      %p97 = scmp.ne.s32.totalorder %s85, %s86
      %p98 = scmp.eq.s32.totalorder %s29, 1
      %p99 = por %p97, %p98
      %p101 = scmp.ne.s32.totalorder %s86, %s100
      %p102 = scmp.eq.s32.totalorder %s29, 0
      %p103 = por %p101, %p102
      %s105 = sadd.s32 %s104, 1
      %p108 = scmp.eq.s32.totalorder %s23, 1
      %p109 = scmp.ne.s32.totalorder %s104, %s106
      %p110 = scmp.eq.s32.totalorder %s23, 0
      %p111 = por %p109, %p110
      %p112 = scmp.ne.s32.totalorder %s104, %s106
      %p113 = scmp.eq.s32.totalorder %s28, 1
      %p114 = por %p112, %p113
      %p115 = scmp.ne.s32.totalorder %s106, %s107
      %p116 = scmp.eq.s32.totalorder %s28, 0
      %p117 = por %p115, %p116
      %p118 = scmp.ne.s32.totalorder %s106, %s107
      %p119 = scmp.eq.s32.totalorder %s29, 1
      %p120 = por %p118, %p119
      %p122 = scmp.ne.s32.totalorder %s107, %s121
      %p123 = scmp.eq.s32.totalorder %s29, 0
      %p124 = por %p122, %p123
      %s126 = sadd.s32 %s125, 1
      %p129 = scmp.eq.s32.totalorder %s23, 1
      %p130 = scmp.ne.s32.totalorder %s125, %s127
      %p131 = scmp.eq.s32.totalorder %s23, 0
      %p132 = por %p130, %p131
      %p133 = scmp.ne.s32.totalorder %s125, %s127
      %p134 = scmp.eq.s32.totalorder %s28, 1
      %p135 = por %p133, %p134
      %p136 = scmp.ne.s32.totalorder %s127, %s128
      %p137 = scmp.eq.s32.totalorder %s28, 0
      %p138 = por %p136, %p137
      %p139 = scmp.ne.s32.totalorder %s127, %s128
      %p140 = scmp.eq.s32.totalorder %s29, 1
      %p141 = por %p139, %p140
      %p143 = scmp.ne.s32.totalorder %s128, %s142
      %p144 = scmp.eq.s32.totalorder %s29, 0
      %p145 = por %p143, %p144
      %s147 = sadd.s32 %s146, 1
      %p150 = scmp.eq.s32.totalorder %s23, 1
      %p151 = scmp.ne.s32.totalorder %s146, %s148
      %p152 = scmp.eq.s32.totalorder %s23, 0
      %p153 = por %p151, %p152
      %p154 = scmp.ne.s32.totalorder %s146, %s148
      %p155 = scmp.eq.s32.totalorder %s28, 1
      %p156 = por %p154, %p155
      %p157 = scmp.ne.s32.totalorder %s148, %s149
      %p158 = scmp.eq.s32.totalorder %s28, 0
      %p159 = por %p157, %p158
      %p160 = scmp.ne.s32.totalorder %s148, %s149
      %p161 = scmp.eq.s32.totalorder %s29, 1
      %p162 = por %p160, %p161
      %p164 = scmp.ne.s32.totalorder %s149, %s163
      %p165 = scmp.eq.s32.totalorder %s29, 0
      %p166 = por %p164, %p165
      %s168 = sadd.s32 %s167, 1
      %p171 = scmp.eq.s32.totalorder %s23, 1
      %p172 = scmp.ne.s32.totalorder %s167, %s169
      %p173 = scmp.eq.s32.totalorder %s23, 0
      %p174 = por %p172, %p173
      %p175 = scmp.ne.s32.totalorder %s167, %s169
      %p176 = scmp.eq.s32.totalorder %s28, 1
      %p177 = por %p175, %p176
      %p178 = scmp.ne.s32.totalorder %s169, %s170
      %p179 = scmp.eq.s32.totalorder %s28, 0
      %p180 = por %p178, %p179
      %p181 = scmp.ne.s32.totalorder %s169, %s170
      %p182 = scmp.eq.s32.totalorder %s29, 1
      %p183 = por %p181, %p182
      %p185 = scmp.ne.s32.totalorder %s170, %s184
      %p186 = scmp.eq.s32.totalorder %s29, 0
      %p187 = por %p185, %p186
      %s188 = ssub.s32 %s23, %s30
      %p189 = scmp.eq.s32.totalorder %s188, 0
      %s191 = sadd.s32 %s190, 1
      %s192 = scalar_select %p189, %s190, %s191
      %p195 = pneg %p189
      %p196 = scmp.eq.s32.totalorder %s23, 1
      %p197 = por %p195, %p196
      %p198 = scmp.ne.s32.totalorder %s190, %s193
      %p199 = scmp.eq.s32.totalorder %s23, 0
      %p200 = por %p198, %p199
      %p201 = scmp.ne.s32.totalorder %s190, %s193
      %p202 = scmp.eq.s32.totalorder %s28, 1
      %p203 = por %p201, %p202
      %p204 = scmp.ne.s32.totalorder %s193, %s194
      %p205 = scmp.eq.s32.totalorder %s28, 0
      %p206 = por %p204, %p205
      %p207 = scmp.ne.s32.totalorder %s193, %s194
      %p208 = scmp.eq.s32.totalorder %s29, 1
      %p209 = por %p207, %p208
      %p211 = scmp.ne.s32.totalorder %s194, %s210
      %p212 = scmp.eq.s32.totalorder %s29, 0
      %p213 = por %p211, %p212
      %p214 = scmp.le.s32.totalorder 1, %s23
      %p215 = scmp.lt.s32.totalorder %s23, 3
      %p216 = pnand %p214, %p215
      %p217 = pneg %p216
      // Predicated region
      $region9: #{tpu_custom_call.1} parent=5 // pred_check
        _
      $region10: #{tpu_custom_call.1} parent=5 // pred_check_branch
        %219 = sbr.rel (%p216) target = $region12
      $region11: #{tpu_custom_call.1} parent=5 // pred_region
        %s220 = ssub.s32 %s23, 1
        // Predicated region
        $region13: #{tpu_custom_call.1} parent=11 // pred_check
          %p221 = pneg %p96
        $region14: #{tpu_custom_call.1} parent=11 // pred_check_branch
          %223 = sbr.rel (%p221) target = $region16
        $region15: #{tpu_custom_call.1} parent=11 // pred_region
          %s225 = ssub.s32 128, 128
          %226 = vsyncadd [#allocation7], %s225
          %s228 = sshll.u32 [#allocation8], 4
          %s229 = int_to_ptr.vmem [resolvable:$true] %s228
          %231 = dma.hbm_to_vmem [thread:$0]  %s2, 128, %s229, [#allocation7]
        $region16: #{tpu_custom_call.1} parent=11 // pred_fallthru
          _
        // Predicated region
        $region17: #{tpu_custom_call.1} parent=11 // pred_check
          %p232 = pneg %p117
        $region18: #{tpu_custom_call.1} parent=11 // pred_check_branch
          %234 = sbr.rel (%p232) target = $region20
        $region19: #{tpu_custom_call.1} parent=11 // pred_region
          %s236 = ssub.s32 512, 512
          %237 = vsyncadd [#allocation10], %s236
          %s238 = sshll.u32 [#allocation9], 4
          %s239 = int_to_ptr.vmem [resolvable:$true] %s238
          %244 = dma.hbm_to_vmem [thread:$0]  %s3, 512, %s239, [#allocation10], 128, 128, 8
        $region20: #{tpu_custom_call.1} parent=11 // pred_fallthru
          _
        // Predicated region
        $region21: #{tpu_custom_call.1} parent=11 // pred_check
          %p245 = pneg %p138
        $region22: #{tpu_custom_call.1} parent=11 // pred_check_branch
          %247 = sbr.rel (%p245) target = $region24
        $region23: #{tpu_custom_call.1} parent=11 // pred_region
          _
        $region24: #{tpu_custom_call.1} parent=11 // pred_fallthru
          _
        // Predicated region
        $region25: #{tpu_custom_call.1} parent=11 // pred_check
          %p248 = pneg %p159
        $region26: #{tpu_custom_call.1} parent=11 // pred_check_branch
          %250 = sbr.rel (%p248) target = $region28
        $region27: #{tpu_custom_call.1} parent=11 // pred_region
          %s252 = ssub.s32 512, 512
          %253 = vsyncadd [#allocation10], %s252
          %s254 = sshll.u32 [#allocation11], 4
          %s255 = int_to_ptr.vmem [resolvable:$true] %s254
          %260 = dma.hbm_to_vmem [thread:$0]  %s5, 512, %s255, [#allocation10], 128, 128, 8
        $region28: #{tpu_custom_call.1} parent=11 // pred_fallthru
          _
        // Predicated region
        $region29: #{tpu_custom_call.1} parent=11 // pred_check
          %p261 = pneg %p180
        $region30: #{tpu_custom_call.1} parent=11 // pred_check_branch
          %263 = sbr.rel (%p261) target = $region32
        $region31: #{tpu_custom_call.1} parent=11 // pred_region
          _
        $region32: #{tpu_custom_call.1} parent=11 // pred_fallthru
          _
      $region12: #{tpu_custom_call.1} parent=5 // pred_fallthru
        _
      %p264 = scmp.lt.s32.totalorder %s23, 2
      // Predicated region
      $region33: #{tpu_custom_call.1} parent=5 // pred_check
        %p265 = pneg %p264
      $region34: #{tpu_custom_call.1} parent=5 // pred_check_branch
        %267 = sbr.rel (%p265) target = $region36
      $region35: #{tpu_custom_call.1} parent=5 // pred_region
        // Predicated region
        $region37: #{tpu_custom_call.1} parent=35 // pred_check
          %p268 = pneg %p43
        $region38: #{tpu_custom_call.1} parent=35 // pred_check_branch
          %270 = sbr.rel (%p268) target = $region40
        $region39: #{tpu_custom_call.1} parent=35 // pred_region
          %s271 = sand.u32 %s33, 1
          %s272 = scalar_lea.sflag [#allocation4], %s271
          %s273 = sand.u32 %s33, 1
          %s274 = smul.addr %s273, 8
          %s275 = scalar_lea.vmem [#allocation3], %s274
          %s277 = ssub.s32 128, 128
          %278 = vsyncadd %s272, %s277
          %s279 = smul.addr %s23, 128
          %s280 = scalar_lea.hbm %s0, %s279
          %s282 = sshll.u32 %s275, 4
          %s283 = int_to_ptr.vmem [resolvable:$true] %s282
          %285 = dma.hbm_to_vmem [thread:$0]  %s280, 128, %s283, %s272
        $region40: #{tpu_custom_call.1} parent=35 // pred_fallthru
          _
        // Predicated region
        $region41: #{tpu_custom_call.1} parent=35 // pred_check
          %p286 = pneg %p69
        $region42: #{tpu_custom_call.1} parent=35 // pred_check_branch
          %288 = sbr.rel (%p286) target = $region44
        $region43: #{tpu_custom_call.1} parent=35 // pred_region
          %s289 = sand.u32 %s23, 1
          %s290 = scalar_lea.sflag [#allocation7], %s289
          %s291 = sand.u32 %s59, 1
          %s292 = scalar_lea.vmem [#allocation6], %s291
          %s294 = ssub.s32 16, 16
          %295 = vsyncadd %s290, %s294
          %s296 = smul.addr %s23, 16
          %s297 = scalar_lea.hbm %s1, %s296
          %s299 = sshll.u32 %s292, 4
          %s300 = int_to_ptr.vmem [resolvable:$true] %s299
          %302 = dma.hbm_to_vmem [thread:$0]  %s297, 16, %s300, %s290
        $region44: #{tpu_custom_call.1} parent=35 // pred_fallthru
          _
      $region36: #{tpu_custom_call.1} parent=5 // pred_fallthru
        _
      %p303 = scmp.le.s32.totalorder 1, %s23
      %p304 = scmp.lt.s32.totalorder %s23, 3
      %p305 = pnand %p303, %p304
      %p306 = pneg %p305
      // Predicated region
      $region45: #{tpu_custom_call.1} parent=5 // pred_check
        _
      $region46: #{tpu_custom_call.1} parent=5 // pred_check_branch
        %308 = sbr.rel (%p305) target = $region48
      $region47: #{tpu_custom_call.1} parent=5 // pred_region
        %s309 = ssub.s32 %s23, 1
        %s310 = sand.u32 %s36, 1
        %s311 = scalar_lea.sflag [#allocation4], %s310
        %s312 = sand.u32 %s36, 1
        %s313 = smul.addr %s312, 8
        %s314 = scalar_lea.vmem [#allocation3], %s313
        // Predicated region
        $region49: #{tpu_custom_call.1} parent=47 // pred_check
          %p315 = pneg %p49
        $region50: #{tpu_custom_call.1} parent=47 // pred_check_branch
          %317 = sbr.rel (%p315) target = $region52
        $region51: #{tpu_custom_call.1} parent=47 // pred_region
          %318 = dma.done %s311, 128
        $region52: #{tpu_custom_call.1} parent=47 // pred_fallthru
          _
        %s319 = sand.u32 %s28, 1
        %s320 = scalar_lea.sflag [#allocation7], %s319
        %s321 = sand.u32 %s62, 1
        %s322 = scalar_lea.vmem [#allocation6], %s321
        // Predicated region
        $region53: #{tpu_custom_call.1} parent=47 // pred_check
          %p323 = pneg %p75
        $region54: #{tpu_custom_call.1} parent=47 // pred_check_branch
          %325 = sbr.rel (%p323) target = $region56
        $region55: #{tpu_custom_call.1} parent=47 // pred_region
          %326 = dma.done %s320, 16
        $region56: #{tpu_custom_call.1} parent=47 // pred_fallthru
          _
        // Predicated region
        $region57: #{tpu_custom_call.1} parent=47 // pred_check
          %p327 = pneg %p96
        $region58: #{tpu_custom_call.1} parent=47 // pred_check_branch
          %329 = sbr.rel (%p327) target = $region60
        $region59: #{tpu_custom_call.1} parent=47 // pred_region
          %330 = dma.done [#allocation7], 128
        $region60: #{tpu_custom_call.1} parent=47 // pred_fallthru
          _
        // Predicated region
        $region61: #{tpu_custom_call.1} parent=47 // pred_check
          %p331 = pneg %p117
        $region62: #{tpu_custom_call.1} parent=47 // pred_check_branch
          %333 = sbr.rel (%p331) target = $region64
        $region63: #{tpu_custom_call.1} parent=47 // pred_region
          %334 = dma.done [#allocation10], 512
        $region64: #{tpu_custom_call.1} parent=47 // pred_fallthru
          _
        // Predicated region
        $region65: #{tpu_custom_call.1} parent=47 // pred_check
          %p335 = pneg %p159
        $region66: #{tpu_custom_call.1} parent=47 // pred_check_branch
          %337 = sbr.rel (%p335) target = $region68
        $region67: #{tpu_custom_call.1} parent=47 // pred_region
          %338 = dma.done [#allocation10], 512
        $region68: #{tpu_custom_call.1} parent=47 // pred_fallthru
          _
        %s339 = sand.u32 %s36, 1
        %s340 = scalar_lea.sflag [#allocation4], %s339
        %s341 = sand.u32 %s36, 1
        %s342 = smul.addr %s341, 8
        %s343 = scalar_lea.vmem [#allocation3], %s342
        %p344 = pneg %p49
        %p345 = pneg %p46
        %s346 = sand.u32 %s28, 1
        %s347 = scalar_lea.sflag [#allocation7], %s346
        %s348 = sand.u32 %s62, 1
        %s349 = scalar_lea.vmem [#allocation6], %s348
        %p350 = pneg %p75
        %p351 = pneg %p72
        %p352 = pneg %p96
        %p353 = pneg %p93
        %p354 = pneg %p117
        %p355 = pneg %p114
        %p356 = pneg %p138
        %p357 = pneg %p135
        %p358 = pneg %p159
        %p359 = pneg %p156
        %p360 = pneg %p180
        %p361 = pneg %p177
        %p362 = pneg %p206
        %p363 = pneg %p203
        %s364 = sand.u32 %s193, 1
        %s365 = scalar_lea.sflag [#allocation5], %s364
        %s366 = sand.u32 %s193, 1
        %s367 = smul.addr %s366, 8
        %s368 = scalar_lea.vmem [#allocation12], %s367
        %v369 = vld [vmem:[%s314] sm:$0xff]
        %v370 = vld [vmem:[#allocation9] sm:$0xff]
        %v371 = vld [vmem:[#allocation9 + $0x8] sm:$0xff]
        %v372 = vld [vmem:[#allocation9 + $0x10] sm:$0xff]
        %v373 = vld [vmem:[#allocation9 + $0x18] sm:$0xff]
        %v374 = vld [vmem:[%s4] sm:$0x1]
        %v376 = vlaneseq
        %v377 = vshrl.u32 %v376, 7
        %v378 = vsub.s32 0, %v377
        %v379 = vrot.slane %v374, %v378
        %vm381 = vcmask 261120
        %v383 = vsel %vm381, %v369, 0
        %385 = vmatprep.subr.mxu0 0.0
        %386 = vmatpush1.msra.mxu0 0.0
        %387 = vmatprep.subr.mxu0 0.0
        %388 = vmatpush1.msra.mxu0 0.0
        %389 = vmatprep.subr.mxu0 0.0
        %390 = vmatpush1.msra.mxu0 0.0
        %391 = vmatprep.subr.mxu0 0.0
        %392 = vmatpush1.msra.mxu0 0.0
        %393 = vmatprep.subr.mxu0 0.0
        %394 = vmatpush1.msra.mxu0 0.0
        %395 = vmatprep.subr.mxu0 0.0
        %396 = vmatpush1.msra.mxu0 0.0
        %397 = vmatprep.subr.mxu0 0.0
        %398 = vmatpush1.msra.mxu0 0.0
        %399 = vmatprep.subr.mxu0 0.0
        %400 = vmatpush1.msra.mxu0 0.0
        %401 = vmatprep.subr.mxu0 0.0
        %402 = vmatpush1.msra.mxu0 0.0
        %403 = vmatprep.subr.mxu0 0.0
        %404 = vmatpush1.msra.mxu0 0.0
        %405 = vmatprep.subr.mxu0 0.0
        %406 = vmatpush1.msra.mxu0 0.0
        %407 = vmatprep.subr.mxu0 0.0
        %408 = vmatpush1.msra.mxu0 0.0
        %409 = vmatprep.subr.mxu0 0.0
        %410 = vmatpush1.msra.mxu0 %v373
        %411 = vmatprep.subr.mxu0 0.0
        %412 = vmatpush1.msra.mxu0 %v372
        %413 = vmatprep.subr.mxu0 0.0
        %414 = vmatpush1.msra.mxu0 %v371
        %415 = vmatprep.subr.mxu0 0.0
        %416 = vmatpush1.msra.mxu0 %v370
        %417 = vmatprep.subr.mxu0 0.0
        %418 = vmatpush2.msra.mxu0 0.0
        %419 = vmatprep.subr.mxu0 0.0
        %420 = vmatpush2.msra.mxu0 0.0
        %421 = vmatprep.subr.mxu0 0.0
        %422 = vmatpush2.msra.mxu0 0.0
        %423 = vmatprep.subr.mxu0 0.0
        %424 = vmatpush2.msra.mxu0 0.0
        %425 = vmatprep.subr.mxu0 0.0
        %426 = vmatpush2.msra.mxu0 0.0
        %427 = vmatprep.subr.mxu0 0.0
        %428 = vmatpush2.msra.mxu0 0.0
        %429 = vmatprep.subr.mxu0 0.0
        %430 = vmatpush2.msra.mxu0 0.0
        %431 = vmatprep.subr.mxu0 0.0
        %432 = vmatpush2.msra.mxu0 0.0
        %433 = vmatprep.subr.mxu0 0.0
        %434 = vmatpush2.msra.mxu0 0.0
        %435 = vmatprep.subr.mxu0 0.0
        %436 = vmatpush2.msra.mxu0 0.0
        %437 = vmatprep.subr.mxu0 0.0
        %438 = vmatpush2.msra.mxu0 0.0
        %439 = vmatprep.subr.mxu0 0.0
        %440 = vmatpush2.msra.mxu0 0.0
        %441 = vmatprep.subr.mxu0 0.0
        %442 = vmatpush2.msra.mxu0 0.0
        %443 = vmatprep.subr.mxu0 0.0
        %444 = vmatpush2.msra.mxu0 0.0
        %445 = vmatprep.subr.mxu0 0.0
        %446 = vmatpush2.msra.mxu0 0.0
        %447 = vmatprep.subr.mxu0 0.0
        %448 = vmatpush2.msra.mxu0 0.0
        %449 = vmatprep.mubr.f32.mxu0 0.0
        %450 = vmatmul.mubr.f32.gmra.mxu0 %v383
        %v451 = vpop.f32.mrf.mxu0
        %v452 = vadd.f32 %v379, %v451
        %v453 = vpop.f32.mrf.mxu0
        %454 = vdwg.mxu0
        %v455 = vmul.f32 %v452, 0.35355338
        %v456 = vld [vmem:[#allocation8] sm:$0xff]
        %v457 = vld [vmem:[%s322] sm:$0x1]
        %v459 = vlaneseq
        %v460 = vshrl.u32 %v459, 7
        %v461 = vsub.s32 0, %v460
        %v462 = vrot.slane %v457, %v461
        %v464 = vadd.f32 %v456, %v462
        %466 = vrot.lane.b32.xlu0 %v452, 96
        %v467 = vpop.permute.xlu0 %466
        %vm468 = vcmask 64512
        %v470 = vsel %vm468, %v455, 0
        %v472 = vsel %vm468, %v467, 0
        %474 = vmatprep.subr.mxu0 0.0
        %475 = vmatpush1.xpose.msra.mxu0 0.0
        %476 = vmatprep.subr.mxu0 0.0
        %477 = vmatpush1.xpose.msra.mxu0 0.0
        %478 = vmatprep.subr.mxu0 0.0
        %479 = vmatpush1.xpose.msra.mxu0 0.0
        %480 = vmatprep.subr.mxu0 0.0
        %481 = vmatpush1.xpose.msra.mxu0 0.0
        %482 = vmatprep.subr.mxu0 0.0
        %483 = vmatpush1.xpose.msra.mxu0 0.0
        %484 = vmatprep.subr.mxu0 0.0
        %485 = vmatpush1.xpose.msra.mxu0 0.0
        %486 = vmatprep.subr.mxu0 0.0
        %487 = vmatpush1.xpose.msra.mxu0 0.0
        %488 = vmatprep.subr.mxu0 0.0
        %489 = vmatpush1.xpose.msra.mxu0 0.0
        %490 = vmatprep.subr.mxu0 0.0
        %491 = vmatpush1.xpose.msra.mxu0 0.0
        %492 = vmatprep.subr.mxu0 0.0
        %493 = vmatpush1.xpose.msra.mxu0 0.0
        %494 = vmatprep.subr.mxu0 0.0
        %495 = vmatpush1.xpose.msra.mxu0 0.0
        %496 = vmatprep.subr.mxu0 0.0
        %497 = vmatpush1.xpose.msra.mxu0 0.0
        %498 = vmatprep.subr.mxu0 0.0
        %499 = vmatpush1.xpose.msra.mxu0 0.0
        %500 = vmatprep.subr.mxu0 0.0
        %501 = vmatpush1.xpose.msra.mxu0 0.0
        %502 = vmatprep.subr.mxu0 0.0
        %503 = vmatpush1.xpose.msra.mxu0 0.0
        %504 = vmatprep.subr.mxu0 0.0
        %505 = vmatpush1.xpose.msra.mxu0 %v472
        %506 = vmatprep.subr.mxu0 0.0
        %507 = vmatpush2.xpose.msra.mxu0 0.0
        %508 = vmatprep.subr.mxu0 0.0
        %509 = vmatpush2.xpose.msra.mxu0 0.0
        %510 = vmatprep.subr.mxu0 0.0
        %511 = vmatpush2.xpose.msra.mxu0 0.0
        %512 = vmatprep.subr.mxu0 0.0
        %513 = vmatpush2.xpose.msra.mxu0 0.0
        %514 = vmatprep.subr.mxu0 0.0
        %515 = vmatpush2.xpose.msra.mxu0 0.0
        %516 = vmatprep.subr.mxu0 0.0
        %517 = vmatpush2.xpose.msra.mxu0 0.0
        %518 = vmatprep.subr.mxu0 0.0
        %519 = vmatpush2.xpose.msra.mxu0 0.0
        %520 = vmatprep.subr.mxu0 0.0
        %521 = vmatpush2.xpose.msra.mxu0 0.0
        %522 = vmatprep.subr.mxu0 0.0
        %523 = vmatpush2.xpose.msra.mxu0 0.0
        %524 = vmatprep.subr.mxu0 0.0
        %525 = vmatpush2.xpose.msra.mxu0 0.0
        %526 = vmatprep.subr.mxu0 0.0
        %527 = vmatpush2.xpose.msra.mxu0 0.0
        %528 = vmatprep.subr.mxu0 0.0
        %529 = vmatpush2.xpose.msra.mxu0 0.0
        %530 = vmatprep.subr.mxu0 0.0
        %531 = vmatpush2.xpose.msra.mxu0 0.0
        %532 = vmatprep.subr.mxu0 0.0
        %533 = vmatpush2.xpose.msra.mxu0 0.0
        %534 = vmatprep.subr.mxu0 0.0
        %535 = vmatpush2.xpose.msra.mxu0 0.0
        %536 = vmatprep.subr.mxu0 0.0
        %537 = vmatpush2.xpose.msra.mxu0 0.0
        %538 = vmatprep.mubr.f32.mxu0 0.0
        %539 = vmatmul.mubr.f32.gmra.mxu0 %v470
        %v540 = vpop.f32.mrf.mxu0
        %v541 = vadd.f32 %v464, %v540
        %v542 = vpop.f32.mrf.mxu0
        %543 = vdwg.mxu0
        %v544 = vsel %vm468, %v541, -inf
        %545 = vmax.xlane.f32.xlu0 %v544
        %v546 = vpop.xlane.xlu0 %545
        %v547 = vsub.f32 %v541, %v546
        %v548 = vmul.f32 %v547, 1.442695
        %v549 = vpow.pop %v548
        %v550 = vsel %vm468, %v549, 0.0
        %551 = vadd.xlane.f32.xlu0 %v550
        %v552 = vpop.xlane.xlu0 %551
        %v553 = vrcp.pop %v552
        %v554 = vmul.f32 %v549, %v553
        %555 = vrot.lane.b32.xlu0 %v452, 64
        %v556 = vpop.permute.xlu0 %555
        %v559 = vsel %vm468, %v554, 0
        %561 = vmatprep.subr.mxu0 0.0
        %562 = vmatpush1.msra.mxu0 0.0
        %563 = vmatprep.subr.mxu0 0.0
        %564 = vmatpush1.msra.mxu0 0.0
        %565 = vmatprep.subr.mxu0 0.0
        %566 = vmatpush1.msra.mxu0 0.0
        %567 = vmatprep.subr.mxu0 0.0
        %568 = vmatpush1.msra.mxu0 0.0
        %569 = vmatprep.subr.mxu0 0.0
        %570 = vmatpush1.msra.mxu0 0.0
        %571 = vmatprep.subr.mxu0 0.0
        %572 = vmatpush1.msra.mxu0 0.0
        %573 = vmatprep.subr.mxu0 0.0
        %574 = vmatpush1.msra.mxu0 0.0
        %575 = vmatprep.subr.mxu0 0.0
        %576 = vmatpush1.msra.mxu0 0.0
        %577 = vmatprep.subr.mxu0 0.0
        %578 = vmatpush1.msra.mxu0 0.0
        %579 = vmatprep.subr.mxu0 0.0
        %580 = vmatpush1.msra.mxu0 0.0
        %581 = vmatprep.subr.mxu0 0.0
        %582 = vmatpush1.msra.mxu0 0.0
        %583 = vmatprep.subr.mxu0 0.0
        %584 = vmatpush1.msra.mxu0 0.0
        %585 = vmatprep.subr.mxu0 0.0
        %586 = vmatpush1.msra.mxu0 0.0
        %587 = vmatprep.subr.mxu0 0.0
        %588 = vmatpush1.msra.mxu0 0.0
        %589 = vmatprep.subr.mxu0 0.0
        %590 = vmatpush1.msra.mxu0 0.0
        %591 = vmatprep.subr.mxu0 0.0
        %592 = vmatpush1.msra.mxu0 %v556
        %593 = vmatprep.subr.mxu0 0.0
        %594 = vmatpush2.msra.mxu0 0.0
        %595 = vmatprep.subr.mxu0 0.0
        %596 = vmatpush2.msra.mxu0 0.0
        %597 = vmatprep.subr.mxu0 0.0
        %598 = vmatpush2.msra.mxu0 0.0
        %599 = vmatprep.subr.mxu0 0.0
        %600 = vmatpush2.msra.mxu0 0.0
        %601 = vmatprep.subr.mxu0 0.0
        %602 = vmatpush2.msra.mxu0 0.0
        %603 = vmatprep.subr.mxu0 0.0
        %604 = vmatpush2.msra.mxu0 0.0
        %605 = vmatprep.subr.mxu0 0.0
        %606 = vmatpush2.msra.mxu0 0.0
        %607 = vmatprep.subr.mxu0 0.0
        %608 = vmatpush2.msra.mxu0 0.0
        %609 = vmatprep.subr.mxu0 0.0
        %610 = vmatpush2.msra.mxu0 0.0
        %611 = vmatprep.subr.mxu0 0.0
        %612 = vmatpush2.msra.mxu0 0.0
        %613 = vmatprep.subr.mxu0 0.0
        %614 = vmatpush2.msra.mxu0 0.0
        %615 = vmatprep.subr.mxu0 0.0
        %616 = vmatpush2.msra.mxu0 0.0
        %617 = vmatprep.subr.mxu0 0.0
        %618 = vmatpush2.msra.mxu0 0.0
        %619 = vmatprep.subr.mxu0 0.0
        %620 = vmatpush2.msra.mxu0 0.0
        %621 = vmatprep.subr.mxu0 0.0
        %622 = vmatpush2.msra.mxu0 0.0
        %623 = vmatprep.subr.mxu0 0.0
        %624 = vmatpush2.msra.mxu0 0.0
        %625 = vmatprep.mubr.f32.mxu0 0.0
        %626 = vmatmul.mubr.f32.gmra.mxu0 %v559
        %v627 = vpop.f32.mrf.mxu0
        %v628 = vadd.f32 0.0, %v627
        %v629 = vpop.f32.mrf.mxu0
        %630 = vdwg.mxu0
        %631 = vst.msk [vmem:[#allocation2] sm:$0xff] %vm468, %v628
        %632 = vrot.lane.b32.xlu0 %v455, 120
        %v633 = vpop.permute.xlu0 %632
        %634 = vrot.lane.b32.xlu0 %v452, 88
        %v635 = vpop.permute.xlu0 %634
        %v636 = vsel %vm468, %v633, 0
        %v638 = vsel %vm468, %v635, 0
        %640 = vmatprep.subr.mxu0 0.0
        %641 = vmatpush1.xpose.msra.mxu0 0.0
        %642 = vmatprep.subr.mxu0 0.0
        %643 = vmatpush1.xpose.msra.mxu0 0.0
        %644 = vmatprep.subr.mxu0 0.0
        %645 = vmatpush1.xpose.msra.mxu0 0.0
        %646 = vmatprep.subr.mxu0 0.0
        %647 = vmatpush1.xpose.msra.mxu0 0.0
        %648 = vmatprep.subr.mxu0 0.0
        %649 = vmatpush1.xpose.msra.mxu0 0.0
        %650 = vmatprep.subr.mxu0 0.0
        %651 = vmatpush1.xpose.msra.mxu0 0.0
        %652 = vmatprep.subr.mxu0 0.0
        %653 = vmatpush1.xpose.msra.mxu0 0.0
        %654 = vmatprep.subr.mxu0 0.0
        %655 = vmatpush1.xpose.msra.mxu0 0.0
        %656 = vmatprep.subr.mxu0 0.0
        %657 = vmatpush1.xpose.msra.mxu0 0.0
        %658 = vmatprep.subr.mxu0 0.0
        %659 = vmatpush1.xpose.msra.mxu0 0.0
        %660 = vmatprep.subr.mxu0 0.0
        %661 = vmatpush1.xpose.msra.mxu0 0.0
        %662 = vmatprep.subr.mxu0 0.0
        %663 = vmatpush1.xpose.msra.mxu0 0.0
        %664 = vmatprep.subr.mxu0 0.0
        %665 = vmatpush1.xpose.msra.mxu0 0.0
        %666 = vmatprep.subr.mxu0 0.0
        %667 = vmatpush1.xpose.msra.mxu0 0.0
        %668 = vmatprep.subr.mxu0 0.0
        %669 = vmatpush1.xpose.msra.mxu0 0.0
        %670 = vmatprep.subr.mxu0 0.0
        %671 = vmatpush1.xpose.msra.mxu0 %v638
        %672 = vmatprep.subr.mxu0 0.0
        %673 = vmatpush2.xpose.msra.mxu0 0.0
        %674 = vmatprep.subr.mxu0 0.0
        %675 = vmatpush2.xpose.msra.mxu0 0.0
        %676 = vmatprep.subr.mxu0 0.0
        %677 = vmatpush2.xpose.msra.mxu0 0.0
        %678 = vmatprep.subr.mxu0 0.0
        %679 = vmatpush2.xpose.msra.mxu0 0.0
        %680 = vmatprep.subr.mxu0 0.0
        %681 = vmatpush2.xpose.msra.mxu0 0.0
        %682 = vmatprep.subr.mxu0 0.0
        %683 = vmatpush2.xpose.msra.mxu0 0.0
        %684 = vmatprep.subr.mxu0 0.0
        %685 = vmatpush2.xpose.msra.mxu0 0.0
        %686 = vmatprep.subr.mxu0 0.0
        %687 = vmatpush2.xpose.msra.mxu0 0.0
        %688 = vmatprep.subr.mxu0 0.0
        %689 = vmatpush2.xpose.msra.mxu0 0.0
        %690 = vmatprep.subr.mxu0 0.0
        %691 = vmatpush2.xpose.msra.mxu0 0.0
        %692 = vmatprep.subr.mxu0 0.0
        %693 = vmatpush2.xpose.msra.mxu0 0.0
        %694 = vmatprep.subr.mxu0 0.0
        %695 = vmatpush2.xpose.msra.mxu0 0.0
        %696 = vmatprep.subr.mxu0 0.0
        %697 = vmatpush2.xpose.msra.mxu0 0.0
        %698 = vmatprep.subr.mxu0 0.0
        %699 = vmatpush2.xpose.msra.mxu0 0.0
        %700 = vmatprep.subr.mxu0 0.0
        %701 = vmatpush2.xpose.msra.mxu0 0.0
        %702 = vmatprep.subr.mxu0 0.0
        %703 = vmatpush2.xpose.msra.mxu0 0.0
        %704 = vmatprep.mubr.f32.mxu0 0.0
        %705 = vmatmul.mubr.f32.gmra.mxu0 %v636
        %v706 = vpop.f32.mrf.mxu0
        %v707 = vadd.f32 %v464, %v706
        %v708 = vpop.f32.mrf.mxu0
        %709 = vdwg.mxu0
        %v710 = vsel %vm468, %v707, -inf
        %711 = vmax.xlane.f32.xlu0 %v710
        %v712 = vpop.xlane.xlu0 %711
        %v713 = vsub.f32 %v707, %v712
        %v714 = vmul.f32 %v713, 1.442695
        %v715 = vpow.pop %v714
        %v716 = vsel %vm468, %v715, 0.0
        %717 = vadd.xlane.f32.xlu0 %v716
        %v718 = vpop.xlane.xlu0 %717
        %v719 = vrcp.pop %v718
        %v720 = vmul.f32 %v715, %v719
        %721 = vrot.lane.b32.xlu0 %v452, 56
        %v722 = vpop.permute.xlu0 %721
        %v725 = vsel %vm468, %v720, 0
        %727 = vmatprep.subr.mxu0 0.0
        %728 = vmatpush1.msra.mxu0 0.0
        %729 = vmatprep.subr.mxu0 0.0
        %730 = vmatpush1.msra.mxu0 0.0
        %731 = vmatprep.subr.mxu0 0.0
        %732 = vmatpush1.msra.mxu0 0.0
        %733 = vmatprep.subr.mxu0 0.0
        %734 = vmatpush1.msra.mxu0 0.0
        %735 = vmatprep.subr.mxu0 0.0
        %736 = vmatpush1.msra.mxu0 0.0
        %737 = vmatprep.subr.mxu0 0.0
        %738 = vmatpush1.msra.mxu0 0.0
        %739 = vmatprep.subr.mxu0 0.0
        %740 = vmatpush1.msra.mxu0 0.0
        %741 = vmatprep.subr.mxu0 0.0
        %742 = vmatpush1.msra.mxu0 0.0
        %743 = vmatprep.subr.mxu0 0.0
        %744 = vmatpush1.msra.mxu0 0.0
        %745 = vmatprep.subr.mxu0 0.0
        %746 = vmatpush1.msra.mxu0 0.0
        %747 = vmatprep.subr.mxu0 0.0
        %748 = vmatpush1.msra.mxu0 0.0
        %749 = vmatprep.subr.mxu0 0.0
        %750 = vmatpush1.msra.mxu0 0.0
        %751 = vmatprep.subr.mxu0 0.0
        %752 = vmatpush1.msra.mxu0 0.0
        %753 = vmatprep.subr.mxu0 0.0
        %754 = vmatpush1.msra.mxu0 0.0
        %755 = vmatprep.subr.mxu0 0.0
        %756 = vmatpush1.msra.mxu0 0.0
        %757 = vmatprep.subr.mxu0 0.0
        %758 = vmatpush1.msra.mxu0 %v722
        %759 = vmatprep.subr.mxu0 0.0
        %760 = vmatpush2.msra.mxu0 0.0
        %761 = vmatprep.subr.mxu0 0.0
        %762 = vmatpush2.msra.mxu0 0.0
        %763 = vmatprep.subr.mxu0 0.0
        %764 = vmatpush2.msra.mxu0 0.0
        %765 = vmatprep.subr.mxu0 0.0
        %766 = vmatpush2.msra.mxu0 0.0
        %767 = vmatprep.subr.mxu0 0.0
        %768 = vmatpush2.msra.mxu0 0.0
        %769 = vmatprep.subr.mxu0 0.0
        %770 = vmatpush2.msra.mxu0 0.0
        %771 = vmatprep.subr.mxu0 0.0
        %772 = vmatpush2.msra.mxu0 0.0
        %773 = vmatprep.subr.mxu0 0.0
        %774 = vmatpush2.msra.mxu0 0.0
        %775 = vmatprep.subr.mxu0 0.0
        %776 = vmatpush2.msra.mxu0 0.0
        %777 = vmatprep.subr.mxu0 0.0
        %778 = vmatpush2.msra.mxu0 0.0
        %779 = vmatprep.subr.mxu0 0.0
        %780 = vmatpush2.msra.mxu0 0.0
        %781 = vmatprep.subr.mxu0 0.0
        %782 = vmatpush2.msra.mxu0 0.0
        %783 = vmatprep.subr.mxu0 0.0
        %784 = vmatpush2.msra.mxu0 0.0
        %785 = vmatprep.subr.mxu0 0.0
        %786 = vmatpush2.msra.mxu0 0.0
        %787 = vmatprep.subr.mxu0 0.0
        %788 = vmatpush2.msra.mxu0 0.0
        %789 = vmatprep.subr.mxu0 0.0
        %790 = vmatpush2.msra.mxu0 0.0
        %791 = vmatprep.mubr.f32.mxu0 0.0
        %792 = vmatmul.mubr.f32.gmra.mxu0 %v725
        %v793 = vpop.f32.mrf.mxu0
        %v794 = vadd.f32 0.0, %v793
        %v795 = vpop.f32.mrf.mxu0
        %796 = vdwg.mxu0
        %798 = vrot.lane.b32.xlu0 %v794, 8
        %v799 = vpop.permute.xlu0 %798
        %vm801 = vcmask 130112
        %802 = vst.msk [vmem:[#allocation2] sm:$0xff] %vm801, %v799
        %803 = vrot.lane.b32.xlu0 %v455, 112
        %v804 = vpop.permute.xlu0 %803
        %805 = vrot.lane.b32.xlu0 %v452, 80
        %v806 = vpop.permute.xlu0 %805
        %v807 = vsel %vm468, %v804, 0
        %v809 = vsel %vm468, %v806, 0
        %811 = vmatprep.subr.mxu0 0.0
        %812 = vmatpush1.xpose.msra.mxu0 0.0
        %813 = vmatprep.subr.mxu0 0.0
        %814 = vmatpush1.xpose.msra.mxu0 0.0
        %815 = vmatprep.subr.mxu0 0.0
        %816 = vmatpush1.xpose.msra.mxu0 0.0
        %817 = vmatprep.subr.mxu0 0.0
        %818 = vmatpush1.xpose.msra.mxu0 0.0
        %819 = vmatprep.subr.mxu0 0.0
        %820 = vmatpush1.xpose.msra.mxu0 0.0
        %821 = vmatprep.subr.mxu0 0.0
        %822 = vmatpush1.xpose.msra.mxu0 0.0
        %823 = vmatprep.subr.mxu0 0.0
        %824 = vmatpush1.xpose.msra.mxu0 0.0
        %825 = vmatprep.subr.mxu0 0.0
        %826 = vmatpush1.xpose.msra.mxu0 0.0
        %827 = vmatprep.subr.mxu0 0.0
        %828 = vmatpush1.xpose.msra.mxu0 0.0
        %829 = vmatprep.subr.mxu0 0.0
        %830 = vmatpush1.xpose.msra.mxu0 0.0
        %831 = vmatprep.subr.mxu0 0.0
        %832 = vmatpush1.xpose.msra.mxu0 0.0
        %833 = vmatprep.subr.mxu0 0.0
        %834 = vmatpush1.xpose.msra.mxu0 0.0
        %835 = vmatprep.subr.mxu0 0.0
        %836 = vmatpush1.xpose.msra.mxu0 0.0
        %837 = vmatprep.subr.mxu0 0.0
        %838 = vmatpush1.xpose.msra.mxu0 0.0
        %839 = vmatprep.subr.mxu0 0.0
        %840 = vmatpush1.xpose.msra.mxu0 0.0
        %841 = vmatprep.subr.mxu0 0.0
        %842 = vmatpush1.xpose.msra.mxu0 %v809
        %843 = vmatprep.subr.mxu0 0.0
        %844 = vmatpush2.xpose.msra.mxu0 0.0
        %845 = vmatprep.subr.mxu0 0.0
        %846 = vmatpush2.xpose.msra.mxu0 0.0
        %847 = vmatprep.subr.mxu0 0.0
        %848 = vmatpush2.xpose.msra.mxu0 0.0
        %849 = vmatprep.subr.mxu0 0.0
        %850 = vmatpush2.xpose.msra.mxu0 0.0
        %851 = vmatprep.subr.mxu0 0.0
        %852 = vmatpush2.xpose.msra.mxu0 0.0
        %853 = vmatprep.subr.mxu0 0.0
        %854 = vmatpush2.xpose.msra.mxu0 0.0
        %855 = vmatprep.subr.mxu0 0.0
        %856 = vmatpush2.xpose.msra.mxu0 0.0
        %857 = vmatprep.subr.mxu0 0.0
        %858 = vmatpush2.xpose.msra.mxu0 0.0
        %859 = vmatprep.subr.mxu0 0.0
        %860 = vmatpush2.xpose.msra.mxu0 0.0
        %861 = vmatprep.subr.mxu0 0.0
        %862 = vmatpush2.xpose.msra.mxu0 0.0
        %863 = vmatprep.subr.mxu0 0.0
        %864 = vmatpush2.xpose.msra.mxu0 0.0
        %865 = vmatprep.subr.mxu0 0.0
        %866 = vmatpush2.xpose.msra.mxu0 0.0
        %867 = vmatprep.subr.mxu0 0.0
        %868 = vmatpush2.xpose.msra.mxu0 0.0
        %869 = vmatprep.subr.mxu0 0.0
        %870 = vmatpush2.xpose.msra.mxu0 0.0
        %871 = vmatprep.subr.mxu0 0.0
        %872 = vmatpush2.xpose.msra.mxu0 0.0
        %873 = vmatprep.subr.mxu0 0.0
        %874 = vmatpush2.xpose.msra.mxu0 0.0
        %875 = vmatprep.mubr.f32.mxu0 0.0
        %876 = vmatmul.mubr.f32.gmra.mxu0 %v807
        %v877 = vpop.f32.mrf.mxu0
        %v878 = vadd.f32 %v464, %v877
        %v879 = vpop.f32.mrf.mxu0
        %880 = vdwg.mxu0
        %v881 = vsel %vm468, %v878, -inf
        %882 = vmax.xlane.f32.xlu0 %v881
        %v883 = vpop.xlane.xlu0 %882
        %v884 = vsub.f32 %v878, %v883
        %v885 = vmul.f32 %v884, 1.442695
        %v886 = vpow.pop %v885
        %v887 = vsel %vm468, %v886, 0.0
        %888 = vadd.xlane.f32.xlu0 %v887
        %v889 = vpop.xlane.xlu0 %888
        %v890 = vrcp.pop %v889
        %v891 = vmul.f32 %v886, %v890
        %892 = vrot.lane.b32.xlu0 %v452, 48
        %v893 = vpop.permute.xlu0 %892
        %v896 = vsel %vm468, %v891, 0
        %898 = vmatprep.subr.mxu0 0.0
        %899 = vmatpush1.msra.mxu0 0.0
        %900 = vmatprep.subr.mxu0 0.0
        %901 = vmatpush1.msra.mxu0 0.0
        %902 = vmatprep.subr.mxu0 0.0
        %903 = vmatpush1.msra.mxu0 0.0
        %904 = vmatprep.subr.mxu0 0.0
        %905 = vmatpush1.msra.mxu0 0.0
        %906 = vmatprep.subr.mxu0 0.0
        %907 = vmatpush1.msra.mxu0 0.0
        %908 = vmatprep.subr.mxu0 0.0
        %909 = vmatpush1.msra.mxu0 0.0
        %910 = vmatprep.subr.mxu0 0.0
        %911 = vmatpush1.msra.mxu0 0.0
        %912 = vmatprep.subr.mxu0 0.0
        %913 = vmatpush1.msra.mxu0 0.0
        %914 = vmatprep.subr.mxu0 0.0
        %915 = vmatpush1.msra.mxu0 0.0
        %916 = vmatprep.subr.mxu0 0.0
        %917 = vmatpush1.msra.mxu0 0.0
        %918 = vmatprep.subr.mxu0 0.0
        %919 = vmatpush1.msra.mxu0 0.0
        %920 = vmatprep.subr.mxu0 0.0
        %921 = vmatpush1.msra.mxu0 0.0
        %922 = vmatprep.subr.mxu0 0.0
        %923 = vmatpush1.msra.mxu0 0.0
        %924 = vmatprep.subr.mxu0 0.0
        %925 = vmatpush1.msra.mxu0 0.0
        %926 = vmatprep.subr.mxu0 0.0
        %927 = vmatpush1.msra.mxu0 0.0
        %928 = vmatprep.subr.mxu0 0.0
        %929 = vmatpush1.msra.mxu0 %v893
        %930 = vmatprep.subr.mxu0 0.0
        %931 = vmatpush2.msra.mxu0 0.0
        %932 = vmatprep.subr.mxu0 0.0
        %933 = vmatpush2.msra.mxu0 0.0
        %934 = vmatprep.subr.mxu0 0.0
        %935 = vmatpush2.msra.mxu0 0.0
        %936 = vmatprep.subr.mxu0 0.0
        %937 = vmatpush2.msra.mxu0 0.0
        %938 = vmatprep.subr.mxu0 0.0
        %939 = vmatpush2.msra.mxu0 0.0
        %940 = vmatprep.subr.mxu0 0.0
        %941 = vmatpush2.msra.mxu0 0.0
        %942 = vmatprep.subr.mxu0 0.0
        %943 = vmatpush2.msra.mxu0 0.0
        %944 = vmatprep.subr.mxu0 0.0
        %945 = vmatpush2.msra.mxu0 0.0
        %946 = vmatprep.subr.mxu0 0.0
        %947 = vmatpush2.msra.mxu0 0.0
        %948 = vmatprep.subr.mxu0 0.0
        %949 = vmatpush2.msra.mxu0 0.0
        %950 = vmatprep.subr.mxu0 0.0
        %951 = vmatpush2.msra.mxu0 0.0
        %952 = vmatprep.subr.mxu0 0.0
        %953 = vmatpush2.msra.mxu0 0.0
        %954 = vmatprep.subr.mxu0 0.0
        %955 = vmatpush2.msra.mxu0 0.0
        %956 = vmatprep.subr.mxu0 0.0
        %957 = vmatpush2.msra.mxu0 0.0
        %958 = vmatprep.subr.mxu0 0.0
        %959 = vmatpush2.msra.mxu0 0.0
        %960 = vmatprep.subr.mxu0 0.0
        %961 = vmatpush2.msra.mxu0 0.0
        %962 = vmatprep.mubr.f32.mxu0 0.0
        %963 = vmatmul.mubr.f32.gmra.mxu0 %v896
        %v964 = vpop.f32.mrf.mxu0
        %v965 = vadd.f32 0.0, %v964
        %v966 = vpop.f32.mrf.mxu0
        %967 = vdwg.mxu0
        %969 = vrot.lane.b32.xlu0 %v965, 16
        %v970 = vpop.permute.xlu0 %969
        %vm972 = vcmask 195712
        %973 = vst.msk [vmem:[#allocation2] sm:$0xff] %vm972, %v970
        %974 = vrot.lane.b32.xlu0 %v455, 104
        %v975 = vpop.permute.xlu0 %974
        %976 = vrot.lane.b32.xlu0 %v452, 72
        %v977 = vpop.permute.xlu0 %976
        %v978 = vsel %vm468, %v975, 0
        %v980 = vsel %vm468, %v977, 0
        %982 = vmatprep.subr.mxu0 0.0
        %983 = vmatpush1.xpose.msra.mxu0 0.0
        %984 = vmatprep.subr.mxu0 0.0
        %985 = vmatpush1.xpose.msra.mxu0 0.0
        %986 = vmatprep.subr.mxu0 0.0
        %987 = vmatpush1.xpose.msra.mxu0 0.0
        %988 = vmatprep.subr.mxu0 0.0
        %989 = vmatpush1.xpose.msra.mxu0 0.0
        %990 = vmatprep.subr.mxu0 0.0
        %991 = vmatpush1.xpose.msra.mxu0 0.0
        %992 = vmatprep.subr.mxu0 0.0
        %993 = vmatpush1.xpose.msra.mxu0 0.0
        %994 = vmatprep.subr.mxu0 0.0
        %995 = vmatpush1.xpose.msra.mxu0 0.0
        %996 = vmatprep.subr.mxu0 0.0
        %997 = vmatpush1.xpose.msra.mxu0 0.0
        %998 = vmatprep.subr.mxu0 0.0
        %999 = vmatpush1.xpose.msra.mxu0 0.0
        %1000 = vmatprep.subr.mxu0 0.0
        %1001 = vmatpush1.xpose.msra.mxu0 0.0
        %1002 = vmatprep.subr.mxu0 0.0
        %1003 = vmatpush1.xpose.msra.mxu0 0.0
        %1004 = vmatprep.subr.mxu0 0.0
        %1005 = vmatpush1.xpose.msra.mxu0 0.0
        %1006 = vmatprep.subr.mxu0 0.0
        %1007 = vmatpush1.xpose.msra.mxu0 0.0
        %1008 = vmatprep.subr.mxu0 0.0
        %1009 = vmatpush1.xpose.msra.mxu0 0.0
        %1010 = vmatprep.subr.mxu0 0.0
        %1011 = vmatpush1.xpose.msra.mxu0 0.0
        %1012 = vmatprep.subr.mxu0 0.0
        %1013 = vmatpush1.xpose.msra.mxu0 %v980
        %1014 = vmatprep.subr.mxu0 0.0
        %1015 = vmatpush2.xpose.msra.mxu0 0.0
        %1016 = vmatprep.subr.mxu0 0.0
        %1017 = vmatpush2.xpose.msra.mxu0 0.0
        %1018 = vmatprep.subr.mxu0 0.0
        %1019 = vmatpush2.xpose.msra.mxu0 0.0
        %1020 = vmatprep.subr.mxu0 0.0
        %1021 = vmatpush2.xpose.msra.mxu0 0.0
        %1022 = vmatprep.subr.mxu0 0.0
        %1023 = vmatpush2.xpose.msra.mxu0 0.0
        %1024 = vmatprep.subr.mxu0 0.0
        %1025 = vmatpush2.xpose.msra.mxu0 0.0
        %1026 = vmatprep.subr.mxu0 0.0
        %1027 = vmatpush2.xpose.msra.mxu0 0.0
        %1028 = vmatprep.subr.mxu0 0.0
        %1029 = vmatpush2.xpose.msra.mxu0 0.0
        %1030 = vmatprep.subr.mxu0 0.0
        %1031 = vmatpush2.xpose.msra.mxu0 0.0
        %1032 = vmatprep.subr.mxu0 0.0
        %1033 = vmatpush2.xpose.msra.mxu0 0.0
        %1034 = vmatprep.subr.mxu0 0.0
        %1035 = vmatpush2.xpose.msra.mxu0 0.0
        %1036 = vmatprep.subr.mxu0 0.0
        %1037 = vmatpush2.xpose.msra.mxu0 0.0
        %1038 = vmatprep.subr.mxu0 0.0
        %1039 = vmatpush2.xpose.msra.mxu0 0.0
        %1040 = vmatprep.subr.mxu0 0.0
        %1041 = vmatpush2.xpose.msra.mxu0 0.0
        %1042 = vmatprep.subr.mxu0 0.0
        %1043 = vmatpush2.xpose.msra.mxu0 0.0
        %1044 = vmatprep.subr.mxu0 0.0
        %1045 = vmatpush2.xpose.msra.mxu0 0.0
        %1046 = vmatprep.mubr.f32.mxu0 0.0
        %1047 = vmatmul.mubr.f32.gmra.mxu0 %v978
        %v1048 = vpop.f32.mrf.mxu0
        %v1049 = vadd.f32 %v464, %v1048
        %v1050 = vpop.f32.mrf.mxu0
        %1051 = vdwg.mxu0
        %v1052 = vsel %vm468, %v1049, -inf
        %1053 = vmax.xlane.f32.xlu0 %v1052
        %v1054 = vpop.xlane.xlu0 %1053
        %v1055 = vsub.f32 %v1049, %v1054
        %v1056 = vmul.f32 %v1055, 1.442695
        %v1057 = vpow.pop %v1056
        %v1058 = vsel %vm468, %v1057, 0.0
        %1059 = vadd.xlane.f32.xlu0 %v1058
        %v1060 = vpop.xlane.xlu0 %1059
        %v1061 = vrcp.pop %v1060
        %v1062 = vmul.f32 %v1057, %v1061
        %1063 = vrot.lane.b32.xlu0 %v452, 40
        %v1064 = vpop.permute.xlu0 %1063
        %v1067 = vsel %vm468, %v1062, 0
        %1069 = vmatprep.subr.mxu0 0.0
        %1070 = vmatpush1.msra.mxu0 0.0
        %1071 = vmatprep.subr.mxu0 0.0
        %1072 = vmatpush1.msra.mxu0 0.0
        %1073 = vmatprep.subr.mxu0 0.0
        %1074 = vmatpush1.msra.mxu0 0.0
        %1075 = vmatprep.subr.mxu0 0.0
        %1076 = vmatpush1.msra.mxu0 0.0
        %1077 = vmatprep.subr.mxu0 0.0
        %1078 = vmatpush1.msra.mxu0 0.0
        %1079 = vmatprep.subr.mxu0 0.0
        %1080 = vmatpush1.msra.mxu0 0.0
        %1081 = vmatprep.subr.mxu0 0.0
        %1082 = vmatpush1.msra.mxu0 0.0
        %1083 = vmatprep.subr.mxu0 0.0
        %1084 = vmatpush1.msra.mxu0 0.0
        %1085 = vmatprep.subr.mxu0 0.0
        %1086 = vmatpush1.msra.mxu0 0.0
        %1087 = vmatprep.subr.mxu0 0.0
        %1088 = vmatpush1.msra.mxu0 0.0
        %1089 = vmatprep.subr.mxu0 0.0
        %1090 = vmatpush1.msra.mxu0 0.0
        %1091 = vmatprep.subr.mxu0 0.0
        %1092 = vmatpush1.msra.mxu0 0.0
        %1093 = vmatprep.subr.mxu0 0.0
        %1094 = vmatpush1.msra.mxu0 0.0
        %1095 = vmatprep.subr.mxu0 0.0
        %1096 = vmatpush1.msra.mxu0 0.0
        %1097 = vmatprep.subr.mxu0 0.0
        %1098 = vmatpush1.msra.mxu0 0.0
        %1099 = vmatprep.subr.mxu0 0.0
        %1100 = vmatpush1.msra.mxu0 %v1064
        %1101 = vmatprep.subr.mxu0 0.0
        %1102 = vmatpush2.msra.mxu0 0.0
        %1103 = vmatprep.subr.mxu0 0.0
        %1104 = vmatpush2.msra.mxu0 0.0
        %1105 = vmatprep.subr.mxu0 0.0
        %1106 = vmatpush2.msra.mxu0 0.0
        %1107 = vmatprep.subr.mxu0 0.0
        %1108 = vmatpush2.msra.mxu0 0.0
        %1109 = vmatprep.subr.mxu0 0.0
        %1110 = vmatpush2.msra.mxu0 0.0
        %1111 = vmatprep.subr.mxu0 0.0
        %1112 = vmatpush2.msra.mxu0 0.0
        %1113 = vmatprep.subr.mxu0 0.0
        %1114 = vmatpush2.msra.mxu0 0.0
        %1115 = vmatprep.subr.mxu0 0.0
        %1116 = vmatpush2.msra.mxu0 0.0
        %1117 = vmatprep.subr.mxu0 0.0
        %1118 = vmatpush2.msra.mxu0 0.0
        %1119 = vmatprep.subr.mxu0 0.0
        %1120 = vmatpush2.msra.mxu0 0.0
        %1121 = vmatprep.subr.mxu0 0.0
        %1122 = vmatpush2.msra.mxu0 0.0
        %1123 = vmatprep.subr.mxu0 0.0
        %1124 = vmatpush2.msra.mxu0 0.0
        %1125 = vmatprep.subr.mxu0 0.0
        %1126 = vmatpush2.msra.mxu0 0.0
        %1127 = vmatprep.subr.mxu0 0.0
        %1128 = vmatpush2.msra.mxu0 0.0
        %1129 = vmatprep.subr.mxu0 0.0
        %1130 = vmatpush2.msra.mxu0 0.0
        %1131 = vmatprep.subr.mxu0 0.0
        %1132 = vmatpush2.msra.mxu0 0.0
        %1133 = vmatprep.mubr.f32.mxu0 0.0
        %1134 = vmatmul.mubr.f32.gmra.mxu0 %v1067
        %v1135 = vpop.f32.mrf.mxu0
        %v1136 = vadd.f32 0.0, %v1135
        %v1137 = vpop.f32.mrf.mxu0
        %1138 = vdwg.mxu0
        %1140 = vrot.lane.b32.xlu0 %v1136, 24
        %v1141 = vpop.permute.xlu0 %1140
        %vm1143 = vcmask 261312
        %1144 = vst.msk [vmem:[#allocation2] sm:$0xff] %vm1143, %v1141
        %v1145 = vld [vmem:[#allocation2] sm:$0xff]
        %v1146 = vld [vmem:[#allocation11] sm:$0xff]
        %v1147 = vld [vmem:[#allocation11 + $0x8] sm:$0xff]
        %v1148 = vld [vmem:[#allocation11 + $0x10] sm:$0xff]
        %v1149 = vld [vmem:[#allocation11 + $0x18] sm:$0xff]
        %v1150 = vld [vmem:[%s6] sm:$0x1]
        %v1152 = vlaneseq
        %v1153 = vshrl.u32 %v1152, 7
        %v1154 = vsub.s32 0, %v1153
        %v1155 = vrot.slane %v1150, %v1154
        %v1158 = vsel %vm381, %v1145, 0
        %1160 = vmatprep.subr.mxu0 0.0
        %1161 = vmatpush1.msra.mxu0 0.0
        %1162 = vmatprep.subr.mxu0 0.0
        %1163 = vmatpush1.msra.mxu0 0.0
        %1164 = vmatprep.subr.mxu0 0.0
        %1165 = vmatpush1.msra.mxu0 0.0
        %1166 = vmatprep.subr.mxu0 0.0
        %1167 = vmatpush1.msra.mxu0 0.0
        %1168 = vmatprep.subr.mxu0 0.0
        %1169 = vmatpush1.msra.mxu0 0.0
        %1170 = vmatprep.subr.mxu0 0.0
        %1171 = vmatpush1.msra.mxu0 0.0
        %1172 = vmatprep.subr.mxu0 0.0
        %1173 = vmatpush1.msra.mxu0 0.0
        %1174 = vmatprep.subr.mxu0 0.0
        %1175 = vmatpush1.msra.mxu0 0.0
        %1176 = vmatprep.subr.mxu0 0.0
        %1177 = vmatpush1.msra.mxu0 0.0
        %1178 = vmatprep.subr.mxu0 0.0
        %1179 = vmatpush1.msra.mxu0 0.0
        %1180 = vmatprep.subr.mxu0 0.0
        %1181 = vmatpush1.msra.mxu0 0.0
        %1182 = vmatprep.subr.mxu0 0.0
        %1183 = vmatpush1.msra.mxu0 0.0
        %1184 = vmatprep.subr.mxu0 0.0
        %1185 = vmatpush1.msra.mxu0 %v1149
        %1186 = vmatprep.subr.mxu0 0.0
        %1187 = vmatpush1.msra.mxu0 %v1148
        %1188 = vmatprep.subr.mxu0 0.0
        %1189 = vmatpush1.msra.mxu0 %v1147
        %1190 = vmatprep.subr.mxu0 0.0
        %1191 = vmatpush1.msra.mxu0 %v1146
        %1192 = vmatprep.subr.mxu0 0.0
        %1193 = vmatpush2.msra.mxu0 0.0
        %1194 = vmatprep.subr.mxu0 0.0
        %1195 = vmatpush2.msra.mxu0 0.0
        %1196 = vmatprep.subr.mxu0 0.0
        %1197 = vmatpush2.msra.mxu0 0.0
        %1198 = vmatprep.subr.mxu0 0.0
        %1199 = vmatpush2.msra.mxu0 0.0
        %1200 = vmatprep.subr.mxu0 0.0
        %1201 = vmatpush2.msra.mxu0 0.0
        %1202 = vmatprep.subr.mxu0 0.0
        %1203 = vmatpush2.msra.mxu0 0.0
        %1204 = vmatprep.subr.mxu0 0.0
        %1205 = vmatpush2.msra.mxu0 0.0
        %1206 = vmatprep.subr.mxu0 0.0
        %1207 = vmatpush2.msra.mxu0 0.0
        %1208 = vmatprep.subr.mxu0 0.0
        %1209 = vmatpush2.msra.mxu0 0.0
        %1210 = vmatprep.subr.mxu0 0.0
        %1211 = vmatpush2.msra.mxu0 0.0
        %1212 = vmatprep.subr.mxu0 0.0
        %1213 = vmatpush2.msra.mxu0 0.0
        %1214 = vmatprep.subr.mxu0 0.0
        %1215 = vmatpush2.msra.mxu0 0.0
        %1216 = vmatprep.subr.mxu0 0.0
        %1217 = vmatpush2.msra.mxu0 0.0
        %1218 = vmatprep.subr.mxu0 0.0
        %1219 = vmatpush2.msra.mxu0 0.0
        %1220 = vmatprep.subr.mxu0 0.0
        %1221 = vmatpush2.msra.mxu0 0.0
        %1222 = vmatprep.subr.mxu0 0.0
        %1223 = vmatpush2.msra.mxu0 0.0
        %1224 = vmatprep.mubr.f32.mxu0 0.0
        %1225 = vmatmul.mubr.f32.gmra.mxu0 %v1158
        %v1226 = vpop.f32.mrf.mxu0
        %v1227 = vadd.f32 %v1155, %v1226
        %v1228 = vpop.f32.mrf.mxu0
        %1229 = vdwg.mxu0
        %1230 = vst.msk [vmem:[%s368] sm:$0xff] %vm381, %v1227
        %s1231 = sand.u32 %s193, 1
        %s1232 = scalar_lea.sflag [#allocation5], %s1231
        %s1233 = sand.u32 %s193, 1
        %s1234 = smul.addr %s1233, 8
        %s1235 = scalar_lea.vmem [#allocation12], %s1234
        // Predicated region
        $region69: #{tpu_custom_call.1} parent=47 // pred_check
          %p1236 = pneg %p203
        $region70: #{tpu_custom_call.1} parent=47 // pred_check_branch
          %1238 = sbr.rel (%p1236) target = $region72
        $region71: #{tpu_custom_call.1} parent=47 // pred_region
          %s1240 = ssub.s32 128, 128
          %1241 = vsyncadd %s1232, %s1240
          %s1242 = smul.addr %s28, 128
          %s1243 = scalar_lea.hbm %s7, %s1242
          %s1245 = sshll.u32 %s1235, 4
          %s1246 = int_to_ptr.vmem [resolvable:$true] %s1245
          %1248 = dma.vmem_to_hbm [thread:$0]  %s1246, 128, %s1243, %s1232
        $region72: #{tpu_custom_call.1} parent=47 // pred_fallthru
          _
      $region48: #{tpu_custom_call.1} parent=5 // pred_fallthru
        _
      %p1249 = scmp.le.s32.totalorder 2, %s23
      // Predicated region
      $region73: #{tpu_custom_call.1} parent=5 // pred_check
        %p1250 = pneg %p1249
      $region74: #{tpu_custom_call.1} parent=5 // pred_check_branch
        %1252 = sbr.rel (%p1250) target = $region76
      $region75: #{tpu_custom_call.1} parent=5 // pred_region
        %s1253 = ssub.s32 %s23, 2
        // Predicated region
        $region77: #{tpu_custom_call.1} parent=75 // pred_check
          %p1254 = pneg %p209
        $region78: #{tpu_custom_call.1} parent=75 // pred_check_branch
          %1256 = sbr.rel (%p1254) target = $region80
        $region79: #{tpu_custom_call.1} parent=75 // pred_region
          %s1257 = sand.u32 %s194, 1
          %s1258 = scalar_lea.sflag [#allocation5], %s1257
          %s1259 = sand.u32 %s194, 1
          %s1260 = smul.addr %s1259, 8
          %s1261 = scalar_lea.vmem [#allocation12], %s1260
          %1262 = dma.done %s1258, 128
        $region80: #{tpu_custom_call.1} parent=75 // pred_fallthru
          _
      $region76: #{tpu_custom_call.1} parent=5 // pred_fallthru
        _
    $region6: #{tpu_custom_call.1} parent=1 // loop_footer
      %s27 = sadd.s32 1, %s23
    $region7: #{tpu_custom_call.1} parent=1 // loop_footer_branch
      %22 = sbr.rel target = $region3
    $region8: #{tpu_custom_call.1} parent=1 // loop_exit
      _
    %1263 = vsyncpa [#allocation4], 1
    %s1264 = scalar_lea.sflag [#allocation4], 1
    %1265 = vsyncpa %s1264, 1
    %1266 = vsyncpa [#allocation7], 1
    %s1267 = scalar_lea.sflag [#allocation7], 1
    %1268 = vsyncpa %s1267, 1
    %1269 = vsyncpa [#allocation10], 1
    %1270 = vsyncpa [#allocation5], 1
    %s1271 = scalar_lea.sflag [#allocation5], 1
    %1272 = vsyncpa %s1271, 1

</llo_original>
